<compile_context>
chip_gen: v6e
topology: v6e:2x2x1
jax: 0.10.0
libtpu: 0.0.40
codegen_flags: <defaults>
</compile_context>

<pallas_src>
import functools

import jax
import jax.numpy as jnp
from jax.experimental import pallas as pl
from jax.experimental.pallas import tpu as pltpu


def _ln_kernel_mxu(x_ref, g_ref, wb_ref, o_ref, *, eps, inv_c):
    """Lane-dense path: each 128-lane row packs `fold` original C-channel rows.

    g_ref is a (128,128) block-diagonal ones matrix (resident): x @ g both
    reduces within each C-lane group and broadcasts the sum back across the
    group's lanes, on the MXU.
    """
    x = x_ref[...].astype(jnp.float32)                      # (tile_n, 128)
    g = g_ref[...]                                          # (128, 128) f32

    s1 = jnp.dot(x, g, preferred_element_type=jnp.float32,
                 precision=jax.lax.Precision.HIGHEST)       # group sums (broadcast in-group)
    mean = s1 * inv_c
    xc = x - mean                                           # two-pass: no cancellation
    s2 = jnp.dot(xc * xc, g, preferred_element_type=jnp.float32,
                 precision=jax.lax.Precision.HIGHEST)
    inv = jax.lax.rsqrt(s2 * inv_c + eps)                   # EUP rsqrt

    w = wb_ref[0:1, :]                                      # (1, 128) f32, weight tiled fold-x
    b = wb_ref[1:2, :]                                      # (1, 128) f32, bias tiled fold-x
    o_ref[...] = (xc * (inv * w) + b).astype(o_ref.dtype)


def _ln_kernel_sum(x_ref, wb_ref, o_ref, *, eps, inv_c):
    """Fallback (C does not divide 128): plain per-row reductions."""
    x = x_ref[...].astype(jnp.float32)                      # (tile_n, C)
    mean = jnp.sum(x, axis=-1, keepdims=True) * inv_c
    xc = x - mean
    var = jnp.sum(xc * xc, axis=-1, keepdims=True) * inv_c
    inv = jax.lax.rsqrt(var + eps)
    w = wb_ref[0:1, :]
    b = wb_ref[1:2, :]
    o_ref[...] = (xc * (inv * w) + b).astype(o_ref.dtype)


def _round_up(v, m):
    return -(-v // m) * m


def _vmem_capacity_bytes():
    try:
        info = pltpu.get_tpu_info()
        cap = getattr(info, "vmem_capacity_bytes", None)
        if cap:
            return int(cap)
    except Exception:
        pass
    return 64 << 20  # conservative: v7x per-TensorCore VMEM


def _pick_tile_n(n_rows, lanes, in_itemsize, out_itemsize, vmem_bytes):
    """Rows (of the folded layout) per grid step."""
    padded_lanes = _round_up(lanes, 128)                    # real VMEM lane padding
    row_bytes = padded_lanes * 2 * (in_itemsize + out_itemsize)   # double-buffered in+out
    row_bytes += padded_lanes * 4 * 4                       # ~4 live f32 in-kernel temps

    small_vmem = vmem_bytes <= (64 << 20)                   # v7x-class: 64 MiB VMEM, 2 TCs
    budget = (20 << 20) if small_vmem else (40 << 20)

    # Sublane alignment is dtype-aware (bf16 packs 16 rows / vreg, int8/fp8 32).
    sub = 8 if in_itemsize >= 4 else (16 if in_itemsize == 2 else 32)

    tile = max(sub, (budget // row_bytes) // sub * sub)
    tile = min(tile, max(sub, _round_up(n_rows, sub)))      # never bigger than needed

    if small_vmem and n_rows > sub:
        # Megacore: keep >= 2 steps and an even number so both TCs stay busy.
        grid = -(-n_rows // tile)
        if grid == 1:
            tile = max(sub, _round_up(-(-n_rows // 2), sub))
        elif grid % 2 == 1:
            tile = max(sub, _round_up(-(-n_rows // (grid + 1)), sub))
    return int(tile)


def layer_norm(x, weight, bias, eps=1e-6, tile_n=None):
    """LayerNorm over the last axis of x (N, C), affine weight/bias of shape (C,)."""
    n, c = x.shape
    orig_n = n

    # Lane fold: (N, C) -> (N/fold, C*fold == 128) is a free row-major reshape
    # in HBM and makes every DMA / vreg / store lane-dense.
    fold = (128 // c) if (c < 128 and 128 % c == 0) else 1
    if fold > 1 and n % fold:
        # Pad only to the next multiple of `fold` (< 4 rows), NOT to a tile
        # multiple; partial last tiles are handled by Pallas store masking.
        pad = fold - n % fold
        x = jnp.pad(x, ((0, pad), (0, 0)))
        n += pad
    n_f = n // fold
    lanes = c * fold
    x_f = x.reshape(n_f, lanes)

    in_itemsize = jnp.dtype(x.dtype).itemsize
    out_itemsize = in_itemsize
    vmem_cap = _vmem_capacity_bytes()
    if tile_n is None:
        tile_n = _pick_tile_n(n_f, lanes, in_itemsize, out_itemsize, vmem_cap)
    grid_n = pl.cdiv(n_f, tile_n)

    # weight/bias tiled across the folded groups, fused into one resident input.
    wb = jnp.stack([jnp.tile(weight.astype(jnp.float32), fold),
                    jnp.tile(bias.astype(jnp.float32), fold)], axis=0)   # (2, lanes)

    # VMEM accounting with real 128-lane padding + in-kernel f32 temps.
    padded_lanes = _round_up(lanes, 128)
    footprint = tile_n * padded_lanes * 2 * (in_itemsize + out_itemsize)
    footprint += tile_n * padded_lanes * 4 * 4
    footprint += 2 * padded_lanes * 4 + (padded_lanes * padded_lanes * 4 if fold > 1 else 0)
    upper = max(16 << 20, vmem_cap - (8 << 20))
    vmem_limit = int(min(max(16 << 20, footprint + (4 << 20)), upper))

    x_spec = pl.BlockSpec((tile_n, lanes), lambda i: (i, 0))
    wb_spec = pl.BlockSpec((2, lanes), lambda i: (0, 0))        # resident
    out_spec = pl.BlockSpec((tile_n, lanes), lambda i: (i, 0))

    if fold > 1:
        # Block-diagonal ones matrix for the in-group MXU reduction (resident).
        grp = jnp.arange(lanes) // c
        gmat = (grp[:, None] == grp[None, :]).astype(jnp.float32)    # (lanes, lanes)
        kernel = functools.partial(_ln_kernel_mxu, eps=float(eps), inv_c=1.0 / c)
        in_specs = [x_spec, pl.BlockSpec((lanes, lanes), lambda i: (0, 0)), wb_spec]
        operands = (x_f, gmat, wb)
        flops = int(n_f * (4 * lanes * lanes + 8 * lanes))
        extra_bytes = lanes * lanes * 4
    else:
        kernel = functools.partial(_ln_kernel_sum, eps=float(eps), inv_c=1.0 / c)
        in_specs = [x_spec, wb_spec]
        operands = (x_f, wb)
        flops = int(8 * n_f * lanes)
        extra_bytes = 0

    cost = pl.CostEstimate(
        flops=flops,
        transcendentals=int(n_f * lanes),
        bytes_accessed=int(n_f * lanes * (in_itemsize + out_itemsize)
                           + 2 * lanes * 4 + extra_bytes),
    )

    # NOTE: pipeline_mode=pl.Buffered(3) on x_spec is worth a sweep on v7x only
    # if a profile shows exposed DMA; it costs VMEM, so it is not enabled here.
    out_f = pl.pallas_call(
        kernel,
        out_shape=jax.ShapeDtypeStruct((n_f, lanes), x.dtype),
        grid_spec=pltpu.PrefetchScalarGridSpec(
            num_scalar_prefetch=0,
            grid=(grid_n,),
            in_specs=in_specs,
            out_specs=out_spec,
        ),
        compiler_params=pltpu.CompilerParams(
            dimension_semantics=("parallel",),
            vmem_limit_bytes=vmem_limit,
        ),
        cost_estimate=cost,
    )(*operands)

    out = out_f.reshape(n, c)
    if n != orig_n:
        out = out[:orig_n]
    return out


if __name__ == "__main__":
    key = jax.random.PRNGKey(0)
    eps = 1e-6  # module default eps=1e-06

    def ref_ln(x, w, b):
        mean = jnp.mean(x, axis=-1, keepdims=True)
        var = jnp.mean((x - mean) ** 2, axis=-1, keepdims=True)
        return (x - mean) / jnp.sqrt(var + eps) * w + b

    ok = True
    # (N, C): aligned lane-fold, ragged lane-fold, and a C that does not divide
    # 128 (exercises the non-folded fallback path).
    for i, (n, c) in enumerate(((64, 32), (37, 32), (24, 48))):
        kx, kw, kb = jax.random.split(jax.random.fold_in(key, i), 3)
        x = jax.random.normal(kx, (n, c), dtype=jnp.float32)
        w = jnp.ones((c,), jnp.float32) + 0.1 * jax.random.normal(kw, (c,), jnp.float32)
        b = 0.1 * jax.random.normal(kb, (c,), jnp.float32)
        out = jax.block_until_ready(layer_norm(x, w, b, eps=eps))
        ok = ok and bool(jnp.allclose(out, ref_ln(x, w, b), atol=1e-5, rtol=1e-5))

    assert ok, "mismatch vs reference"

    # TODO(synk): MinkowskiEngine SparseTensor re-wrapping (coordinate_map_key /
    # coordinate_manager) has no Pallas equivalent; only the feature LayerNorm
    # hot path is implemented here.
    print("KERNEL_OK")
</pallas_src>

<mosaic_0001>
module attributes {stable_mosaic.version = 11 : i64} {
  func.func @_ln_kernel_mxu(%arg0: i32, %arg1: memref<8x128xf32, #tpu.memory_space<vmem>>, %arg2: memref<128x128xf32, #tpu.memory_space<vmem>>, %arg3: memref<2x128xf32, #tpu.memory_space<vmem>>, %arg4: memref<8x128xf32, #tpu.memory_space<vmem>>) attributes {dimension_semantics = [#tpu.dimension_semantics<parallel>], iteration_bounds = array<i64: 2>, scalar_prefetch = 0 : i64, scratch_operands = 0 : i64, tpu.core_type = #tpu.core_type<tc>, window_params = [{transform_indices = @transform_0, window_bounds = array<i64: 8, 128>}, {pipeline_mode = #tpu.pipeline_mode<synchronous>, transform_indices = @transform_1, window_bounds = array<i64: 128, 128>}, {pipeline_mode = #tpu.pipeline_mode<synchronous>, transform_indices = @transform_2, window_bounds = array<i64: 2, 128>}, {transform_indices = @transform_3, window_bounds = array<i64: 8, 128>}]} {
    %c0 = arith.constant 0 : index
    %c0_0 = arith.constant 0 : index
    %0 = vector.load %arg1[%c0, %c0_0] : memref<8x128xf32, #tpu.memory_space<vmem>>, vector<8x128xf32>
    %c0_1 = arith.constant 0 : index
    %c0_2 = arith.constant 0 : index
    %1 = vector.load %arg2[%c0_1, %c0_2] : memref<128x128xf32, #tpu.memory_space<vmem>>, vector<128x128xf32>
    %cst = arith.constant dense<0.000000e+00> : vector<8x128xf32>
    %2 = tpu.matmul %0, %1, %cst {dimension_numbers = #tpu.dot_dimension_numbers<[1], [0], [0], [1], [0, 0, 1, 1], [], []>, precision = #tpu.contract_precision<fp32>} : vector<8x128xf32>, vector<128x128xf32>, vector<8x128xf32> -> vector<8x128xf32>
    %cst_3 = arith.constant 3.125000e-02 : f32
    %3 = vector.broadcast %cst_3 : f32 to vector<8x128xf32>
    %4 = arith.mulf %2, %3 : vector<8x128xf32>
    %5 = arith.subf %0, %4 : vector<8x128xf32>
    %6 = arith.mulf %5, %5 : vector<8x128xf32>
    %cst_4 = arith.constant dense<0.000000e+00> : vector<8x128xf32>
    %7 = tpu.matmul %6, %1, %cst_4 {dimension_numbers = #tpu.dot_dimension_numbers<[1], [0], [0], [1], [0, 0, 1, 1], [], []>, precision = #tpu.contract_precision<fp32>} : vector<8x128xf32>, vector<128x128xf32>, vector<8x128xf32> -> vector<8x128xf32>
    %cst_5 = arith.constant 3.125000e-02 : f32
    %8 = vector.broadcast %cst_5 : f32 to vector<8x128xf32>
    %9 = arith.mulf %7, %8 : vector<8x128xf32>
    %cst_6 = arith.constant 9.99999997E-7 : f32
    %10 = vector.broadcast %cst_6 : f32 to vector<8x128xf32>
    %11 = arith.addf %9, %10 : vector<8x128xf32>
    %12 = math.rsqrt %11 : vector<8x128xf32>
    %c0_7 = arith.constant 0 : index
    %c0_8 = arith.constant 0 : index
    %13 = vector.load %arg3[%c0_7, %c0_8] : memref<2x128xf32, #tpu.memory_space<vmem>>, vector<1x128xf32>
    %c1 = arith.constant 1 : index
    %c0_9 = arith.constant 0 : index
    %14 = vector.load %arg3[%c1, %c0_9] : memref<2x128xf32, #tpu.memory_space<vmem>>, vector<1x128xf32>
    %15 = vector.broadcast %13 : vector<1x128xf32> to vector<8x128xf32>
    %16 = arith.mulf %12, %15 : vector<8x128xf32>
    %17 = arith.mulf %5, %16 : vector<8x128xf32>
    %18 = vector.broadcast %14 : vector<1x128xf32> to vector<8x128xf32>
    %19 = arith.addf %17, %18 : vector<8x128xf32>
    %c0_10 = arith.constant 0 : index
    %c0_11 = arith.constant 0 : index
    %20 = vector.load %arg4[%c0_10, %c0_11] : memref<8x128xf32, #tpu.memory_space<vmem>>, vector<8x128xf32>
    tpu.vector_store %arg4[%c0_10, %c0_11], %19 {strides = array<i32>} : memref<8x128xf32, #tpu.memory_space<vmem>>, vector<8x128xf32>,
    return
  }
  func.func @transform_0(%arg0: i32) -> (i32, i32) {
    %c0_i32 = arith.constant 0 : i32
    %c0_i32_0 = arith.constant 0 : i32
    return %arg0, %c0_i32 : i32, i32
  }
  func.func @transform_1(%arg0: i32) -> (i32, i32) {
    %c0_i32 = arith.constant 0 : i32
    %c0_i32_0 = arith.constant 0 : i32
    %c0_i32_1 = arith.constant 0 : i32
    return %c0_i32, %c0_i32_0 : i32, i32
  }
  func.func @transform_2(%arg0: i32) -> (i32, i32) {
    %c0_i32 = arith.constant 0 : i32
    %c0_i32_0 = arith.constant 0 : i32
    %c0_i32_1 = arith.constant 0 : i32
    return %c0_i32, %c0_i32_0 : i32, i32
  }
  func.func @transform_3(%arg0: i32) -> (i32, i32) {
    %c0_i32 = arith.constant 0 : i32
    %c0_i32_0 = arith.constant 0 : i32
    return %arg0, %c0_i32 : i32, i32
  }
}

</mosaic_0001>

<llo_original>
// kernel: tpu_custom_call.1
$region0: #{tpu_custom_call.1}
  #allocation0 [shape = 'u32[]', space=smem, size = 0x4, offset = 0x4, fixed_abs, tag = 'smem constant byte address 0x4 - core index']
  #allocation1 [shape = 'u32[144,128]{1,0:T(1,128)}', space=vmem, size = 0x12000, scoped, tag = 'internal scratch']
  %s0 = inlined_call_operand.hbm [shape: f32[16,128], index: 0, kind: input, shape index: {}]
  %s1 = inlined_call_operand.hbm [shape: f32[128,128], index: 1, kind: input, shape index: {}]
  %s2 = inlined_call_operand.vmem [shape: f32[2,128], index: 2, kind: input, shape index: {}]
  %s3 = inlined_call_operand.hbm [shape: f32[16,128], index: 3, kind: output, shape index: {}]
  %s4 = sld [smem:[#allocation0]]
  $region53: #{tpu_custom_call.1} parent=0
    _
  %s6 = ssub.s32 1, %s4
  %s7 = scalar_select 0, %s6, %s4
  $region1: #{tpu_custom_call.1} parent=0
    #allocation2 [shape = 'u8[8192]{0}', space=vmem, size = 0x2000, scoped, tag = 'input window, operand 0']
    #allocation3 [shape = 's32[2]{0}', space=sflag, size = 0x8, scoped, tag = 'scoped memory for tpu_custom_call.1']
    #allocation4 [shape = 's32[2]{0}', space=sflag, size = 0x8, scoped, tag = 'scoped memory for tpu_custom_call.1']
    #allocation5 [shape = 'u8[65536]{0}', space=vmem, size = 0x10000, scoped, tag = 'input window, operand 1, single buffered']
    #allocation6 [shape = 's32[1]{0}', space=sflag, size = 0x4, scoped, tag = 'scoped memory for tpu_custom_call.1']
    #allocation7 [shape = 'u8[8192]{0}', space=vmem, size = 0x2000, scoped, tag = 'output window, operand 0']
    %8 = vsyncpa [#allocation3], 0
    %s9 = scalar_lea.sflag [#allocation3], 1
    %10 = vsyncpa %s9, 0
    %11 = vsyncpa [#allocation6], 0
    %12 = vsyncpa [#allocation4], 0
    %s13 = scalar_lea.sflag [#allocation4], 1
    %14 = vsyncpa %s13, 0
    loop: start=0, step=1, limit=4
    $region2: #{tpu_custom_call.1} parent=1 // loop_pre_header
      _
    $region3: #{tpu_custom_call.1} parent=1 // loop_header
      %s16 = sphi 0, %s20
      %p17 = scmp.ge.s32.totalorder %s16, 4
      %s26 = sphi 0, %s28
      %s29 = sphi 0, %s26
      %s30 = sphi 0, %s29
      %s46 = sphi 0, %s30
      %s50 = sphi 0, %s50
      %s52 = sphi 0, %s50
      %s53 = sphi 0, %s52
      %s67 = sphi 0, %s53
      %s71 = sphi 0, %s71
      %s73 = sphi 0, %s71
      %s74 = sphi 0, %s73
      %s88 = sphi 0, %s74
      %s94 = sphi 0, %s96
      %s97 = sphi 0, %s94
      %s98 = sphi 0, %s97
      %s114 = sphi 0, %s98
    $region4: #{tpu_custom_call.1} parent=1 // loop_header_branch
      %19 = sbr.rel (%p17) target = $region8
    $region5: #{tpu_custom_call.1} parent=1 // loop_body
      %s21 = ssub.s32 %s16, 1
      %s22 = ssub.s32 %s16, 2
      %s23 = sadd.s32 %s16, 1
      %s24 = ssub.s32 %s16, %s23
      %p25 = scmp.eq.s32.totalorder %s24, 0
      %s27 = sadd.s32 %s26, 1
      %s28 = scalar_select %p25, %s26, %s27
      %p31 = pneg %p25
      %p32 = scmp.eq.s32.totalorder %s16, 1
      %p33 = por %p31, %p32
      %p34 = scmp.ne.s32.totalorder %s26, %s29
      %p35 = scmp.eq.s32.totalorder %s16, 0
      %p36 = por %p34, %p35
      %p37 = scmp.ne.s32.totalorder %s26, %s29
      %p38 = scmp.eq.s32.totalorder %s21, 1
      %p39 = por %p37, %p38
      %p40 = scmp.ne.s32.totalorder %s29, %s30
      %p41 = scmp.eq.s32.totalorder %s21, 0
      %p42 = por %p40, %p41
      %p43 = scmp.ne.s32.totalorder %s29, %s30
      %p44 = scmp.eq.s32.totalorder %s22, 1
      %p45 = por %p43, %p44
      %p47 = scmp.ne.s32.totalorder %s30, %s46
      %p48 = scmp.eq.s32.totalorder %s22, 0
      %p49 = por %p47, %p48
      %s51 = sadd.s32 %s50, 1
      %p54 = scmp.eq.s32.totalorder %s16, 1
      %p55 = scmp.ne.s32.totalorder %s50, %s52
      %p56 = scmp.eq.s32.totalorder %s16, 0
      %p57 = por %p55, %p56
      %p58 = scmp.ne.s32.totalorder %s50, %s52
      %p59 = scmp.eq.s32.totalorder %s21, 1
      %p60 = por %p58, %p59
      %p61 = scmp.ne.s32.totalorder %s52, %s53
      %p62 = scmp.eq.s32.totalorder %s21, 0
      %p63 = por %p61, %p62
      %p64 = scmp.ne.s32.totalorder %s52, %s53
      %p65 = scmp.eq.s32.totalorder %s22, 1
      %p66 = por %p64, %p65
      %p68 = scmp.ne.s32.totalorder %s53, %s67
      %p69 = scmp.eq.s32.totalorder %s22, 0
      %p70 = por %p68, %p69
      %s72 = sadd.s32 %s71, 1
      %p75 = scmp.eq.s32.totalorder %s16, 1
      %p76 = scmp.ne.s32.totalorder %s71, %s73
      %p77 = scmp.eq.s32.totalorder %s16, 0
      %p78 = por %p76, %p77
      %p79 = scmp.ne.s32.totalorder %s71, %s73
      %p80 = scmp.eq.s32.totalorder %s21, 1
      %p81 = por %p79, %p80
      %p82 = scmp.ne.s32.totalorder %s73, %s74
      %p83 = scmp.eq.s32.totalorder %s21, 0
      %p84 = por %p82, %p83
      %p85 = scmp.ne.s32.totalorder %s73, %s74
      %p86 = scmp.eq.s32.totalorder %s22, 1
      %p87 = por %p85, %p86
      %p89 = scmp.ne.s32.totalorder %s74, %s88
      %p90 = scmp.eq.s32.totalorder %s22, 0
      %p91 = por %p89, %p90
      %s92 = ssub.s32 %s16, %s23
      %p93 = scmp.eq.s32.totalorder %s92, 0
      %s95 = sadd.s32 %s94, 1
      %s96 = scalar_select %p93, %s94, %s95
      %p99 = pneg %p93
      %p100 = scmp.eq.s32.totalorder %s16, 1
      %p101 = por %p99, %p100
      %p102 = scmp.ne.s32.totalorder %s94, %s97
      %p103 = scmp.eq.s32.totalorder %s16, 0
      %p104 = por %p102, %p103
      %p105 = scmp.ne.s32.totalorder %s94, %s97
      %p106 = scmp.eq.s32.totalorder %s21, 1
      %p107 = por %p105, %p106
      %p108 = scmp.ne.s32.totalorder %s97, %s98
      %p109 = scmp.eq.s32.totalorder %s21, 0
      %p110 = por %p108, %p109
      %p111 = scmp.ne.s32.totalorder %s97, %s98
      %p112 = scmp.eq.s32.totalorder %s22, 1
      %p113 = por %p111, %p112
      %p115 = scmp.ne.s32.totalorder %s98, %s114
      %p116 = scmp.eq.s32.totalorder %s22, 0
      %p117 = por %p115, %p116
      %p118 = scmp.le.s32.totalorder 1, %s16
      %p119 = scmp.lt.s32.totalorder %s16, 3
      %p120 = pnand %p118, %p119
      %p121 = pneg %p120
      // Predicated region
      $region9: #{tpu_custom_call.1} parent=5 // pred_check
        _
      $region10: #{tpu_custom_call.1} parent=5 // pred_check_branch
        %123 = sbr.rel (%p120) target = $region12
      $region11: #{tpu_custom_call.1} parent=5 // pred_region
        %s124 = ssub.s32 %s16, 1
        // Predicated region
        $region13: #{tpu_custom_call.1} parent=11 // pred_check
          %p125 = pneg %p63
        $region14: #{tpu_custom_call.1} parent=11 // pred_check_branch
          %127 = sbr.rel (%p125) target = $region16
        $region15: #{tpu_custom_call.1} parent=11 // pred_region
          %s129 = ssub.s32 2048, 2048
          %130 = vsyncadd [#allocation6], %s129
          %s131 = sshll.u32 [#allocation5], 4
          %s132 = int_to_ptr.vmem [resolvable:$true] %s131
          %137 = dma.hbm_to_vmem [thread:$0]  %s1, 2048, %s132, [#allocation6], 128, 128, 8
        $region16: #{tpu_custom_call.1} parent=11 // pred_fallthru
          _
        // Predicated region
        $region17: #{tpu_custom_call.1} parent=11 // pred_check
          %p138 = pneg %p84
        $region18: #{tpu_custom_call.1} parent=11 // pred_check_branch
          %140 = sbr.rel (%p138) target = $region20
        $region19: #{tpu_custom_call.1} parent=11 // pred_region
          _
        $region20: #{tpu_custom_call.1} parent=11 // pred_fallthru
          _
      $region12: #{tpu_custom_call.1} parent=5 // pred_fallthru
        _
      %p141 = scmp.lt.s32.totalorder %s16, 2
      // Predicated region
      $region21: #{tpu_custom_call.1} parent=5 // pred_check
        %p142 = pneg %p141
      $region22: #{tpu_custom_call.1} parent=5 // pred_check_branch
        %144 = sbr.rel (%p142) target = $region24
      $region23: #{tpu_custom_call.1} parent=5 // pred_region
        // Predicated region
        $region25: #{tpu_custom_call.1} parent=23 // pred_check
          %p145 = pneg %p36
        $region26: #{tpu_custom_call.1} parent=23 // pred_check_branch
          %147 = sbr.rel (%p145) target = $region28
        $region27: #{tpu_custom_call.1} parent=23 // pred_region
          %s148 = sand.u32 %s26, 1
          %s149 = scalar_lea.sflag [#allocation3], %s148
          %s150 = sand.u32 %s26, 1
          %s151 = smul.addr %s150, 8
          %s152 = scalar_lea.vmem [#allocation2], %s151
          %s154 = ssub.s32 128, 128
          %155 = vsyncadd %s149, %s154
          %s156 = smul.addr %s16, 128
          %s157 = scalar_lea.hbm %s0, %s156
          %s159 = sshll.u32 %s152, 4
          %s160 = int_to_ptr.vmem [resolvable:$true] %s159
          %162 = dma.hbm_to_vmem [thread:$0]  %s157, 128, %s160, %s149
        $region28: #{tpu_custom_call.1} parent=23 // pred_fallthru
          _
      $region24: #{tpu_custom_call.1} parent=5 // pred_fallthru
        _
      %p163 = scmp.le.s32.totalorder 1, %s16
      %p164 = scmp.lt.s32.totalorder %s16, 3
      %p165 = pnand %p163, %p164
      %p166 = pneg %p165
      // Predicated region
      $region29: #{tpu_custom_call.1} parent=5 // pred_check
        _
      $region30: #{tpu_custom_call.1} parent=5 // pred_check_branch
        %168 = sbr.rel (%p165) target = $region32
      $region31: #{tpu_custom_call.1} parent=5 // pred_region
        %s169 = ssub.s32 %s16, 1
        %s170 = sand.u32 %s29, 1
        %s171 = scalar_lea.sflag [#allocation3], %s170
        %s172 = sand.u32 %s29, 1
        %s173 = smul.addr %s172, 8
        %s174 = scalar_lea.vmem [#allocation2], %s173
        // Predicated region
        $region33: #{tpu_custom_call.1} parent=31 // pred_check
          %p175 = pneg %p42
        $region34: #{tpu_custom_call.1} parent=31 // pred_check_branch
          %177 = sbr.rel (%p175) target = $region36
        $region35: #{tpu_custom_call.1} parent=31 // pred_region
          %178 = dma.done %s171, 128
        $region36: #{tpu_custom_call.1} parent=31 // pred_fallthru
          _
        // Predicated region
        $region37: #{tpu_custom_call.1} parent=31 // pred_check
          %p179 = pneg %p63
        $region38: #{tpu_custom_call.1} parent=31 // pred_check_branch
          %181 = sbr.rel (%p179) target = $region40
        $region39: #{tpu_custom_call.1} parent=31 // pred_region
          %182 = dma.done [#allocation6], 2048
        $region40: #{tpu_custom_call.1} parent=31 // pred_fallthru
          _
        %s183 = sand.u32 %s29, 1
        %s184 = scalar_lea.sflag [#allocation3], %s183
        %s185 = sand.u32 %s29, 1
        %s186 = smul.addr %s185, 8
        %s187 = scalar_lea.vmem [#allocation2], %s186
        %p188 = pneg %p42
        %p189 = pneg %p39
        %p190 = pneg %p63
        %p191 = pneg %p60
        %p192 = pneg %p84
        %p193 = pneg %p81
        %p194 = pneg %p110
        %p195 = pneg %p107
        %s196 = sand.u32 %s97, 1
        %s197 = scalar_lea.sflag [#allocation4], %s196
        %s198 = sand.u32 %s97, 1
        %s199 = smul.addr %s198, 8
        %s200 = scalar_lea.vmem [#allocation7], %s199
        %v201 = vld [vmem:[%s174] sm:$0xff]
        %v202 = vld [vmem:[#allocation5] sm:$0xff]
        %v203 = vld [vmem:[#allocation5 + $0x8] sm:$0xff]
        %v204 = vld [vmem:[#allocation5 + $0x10] sm:$0xff]
        %v205 = vld [vmem:[#allocation5 + $0x18] sm:$0xff]
        %v206 = vld [vmem:[#allocation5 + $0x20] sm:$0xff]
        %v207 = vld [vmem:[#allocation5 + $0x28] sm:$0xff]
        %v208 = vld [vmem:[#allocation5 + $0x30] sm:$0xff]
        %v209 = vld [vmem:[#allocation5 + $0x38] sm:$0xff]
        %v210 = vld [vmem:[#allocation5 + $0x40] sm:$0xff]
        %v211 = vld [vmem:[#allocation5 + $0x48] sm:$0xff]
        %v212 = vld [vmem:[#allocation5 + $0x50] sm:$0xff]
        %v213 = vld [vmem:[#allocation5 + $0x58] sm:$0xff]
        %v214 = vld [vmem:[#allocation5 + $0x60] sm:$0xff]
        %v215 = vld [vmem:[#allocation5 + $0x68] sm:$0xff]
        %v216 = vld [vmem:[#allocation5 + $0x70] sm:$0xff]
        %v217 = vld [vmem:[#allocation5 + $0x78] sm:$0xff]
        %218 = vmatprep.subr.mxu0 0.0
        %v219 = vand.u32 %v217, 4294901760
        %220 = vmatpush1.msra.mxu0 %v219
        %221 = vmatprep.subr.mxu0 0.0
        %v222 = vand.u32 %v216, 4294901760
        %223 = vmatpush1.msra.mxu0 %v222
        %224 = vmatprep.subr.mxu0 0.0
        %v225 = vand.u32 %v215, 4294901760
        %226 = vmatpush1.msra.mxu0 %v225
        %227 = vmatprep.subr.mxu0 0.0
        %v228 = vand.u32 %v214, 4294901760
        %229 = vmatpush1.msra.mxu0 %v228
        %230 = vmatprep.subr.mxu0 0.0
        %v231 = vand.u32 %v213, 4294901760
        %232 = vmatpush1.msra.mxu0 %v231
        %233 = vmatprep.subr.mxu0 0.0
        %v234 = vand.u32 %v212, 4294901760
        %235 = vmatpush1.msra.mxu0 %v234
        %236 = vmatprep.subr.mxu0 0.0
        %v237 = vand.u32 %v211, 4294901760
        %238 = vmatpush1.msra.mxu0 %v237
        %239 = vmatprep.subr.mxu0 0.0
        %v240 = vand.u32 %v210, 4294901760
        %241 = vmatpush1.msra.mxu0 %v240
        %242 = vmatprep.subr.mxu0 0.0
        %v243 = vand.u32 %v209, 4294901760
        %244 = vmatpush1.msra.mxu0 %v243
        %245 = vmatprep.subr.mxu0 0.0
        %v246 = vand.u32 %v208, 4294901760
        %247 = vmatpush1.msra.mxu0 %v246
        %248 = vmatprep.subr.mxu0 0.0
        %v249 = vand.u32 %v207, 4294901760
        %250 = vmatpush1.msra.mxu0 %v249
        %251 = vmatprep.subr.mxu0 0.0
        %v252 = vand.u32 %v206, 4294901760
        %253 = vmatpush1.msra.mxu0 %v252
        %254 = vmatprep.subr.mxu0 0.0
        %v255 = vand.u32 %v205, 4294901760
        %256 = vmatpush1.msra.mxu0 %v255
        %257 = vmatprep.subr.mxu0 0.0
        %v258 = vand.u32 %v204, 4294901760
        %259 = vmatpush1.msra.mxu0 %v258
        %260 = vmatprep.subr.mxu0 0.0
        %v261 = vand.u32 %v203, 4294901760
        %262 = vmatpush1.msra.mxu0 %v261
        %263 = vmatprep.subr.mxu0 0.0
        %v264 = vand.u32 %v202, 4294901760
        %265 = vmatpush1.msra.mxu0 %v264
        %266 = vmatprep.subr.mxu0 0.0
        %267 = vmatpush2.msra.mxu0 0.0
        %268 = vmatprep.subr.mxu0 0.0
        %269 = vmatpush2.msra.mxu0 0.0
        %270 = vmatprep.subr.mxu0 0.0
        %271 = vmatpush2.msra.mxu0 0.0
        %272 = vmatprep.subr.mxu0 0.0
        %273 = vmatpush2.msra.mxu0 0.0
        %274 = vmatprep.subr.mxu0 0.0
        %275 = vmatpush2.msra.mxu0 0.0
        %276 = vmatprep.subr.mxu0 0.0
        %277 = vmatpush2.msra.mxu0 0.0
        %278 = vmatprep.subr.mxu0 0.0
        %279 = vmatpush2.msra.mxu0 0.0
        %280 = vmatprep.subr.mxu0 0.0
        %281 = vmatpush2.msra.mxu0 0.0
        %282 = vmatprep.subr.mxu0 0.0
        %283 = vmatpush2.msra.mxu0 0.0
        %284 = vmatprep.subr.mxu0 0.0
        %285 = vmatpush2.msra.mxu0 0.0
        %286 = vmatprep.subr.mxu0 0.0
        %287 = vmatpush2.msra.mxu0 0.0
        %288 = vmatprep.subr.mxu0 0.0
        %289 = vmatpush2.msra.mxu0 0.0
        %290 = vmatprep.subr.mxu0 0.0
        %291 = vmatpush2.msra.mxu0 0.0
        %292 = vmatprep.subr.mxu0 0.0
        %293 = vmatpush2.msra.mxu0 0.0
        %294 = vmatprep.subr.mxu0 0.0
        %295 = vmatpush2.msra.mxu0 0.0
        %296 = vmatprep.subr.mxu0 0.0
        %297 = vmatpush2.msra.mxu0 0.0
        %298 = vmatprep.mubr.f32.mxu0 0.0
        %v299 = vand.u32 %v201, 4294901760
        %v300 = vsub.f32 %v201, %v299
        %v301 = vand.u32 %v300, 4294901760
        %v302 = vsub.f32 %v300, %v301
        %v303 = vand.u32 %v302, 4294901760
        %304 = vmatmul.mubr.f32.gmra.mxu0 %v303
        %v305 = vpop.f32.mrf.mxu0
        %v306 = vadd.f32 0.0, %v305
        %v307 = vpop.f32.mrf.mxu0
        %308 = vdwg.mxu0
        %309 = vmatprep.subr.mxu0 0.0
        %v310 = vand.u32 %v217, 4294901760
        %v311 = vsub.f32 %v217, %v310
        %v312 = vand.u32 %v311, 4294901760
        %v313 = vsub.f32 %v311, %v312
        %v314 = vand.u32 %v313, 4294901760
        %315 = vmatpush1.msra.mxu0 %v314
        %316 = vmatprep.subr.mxu0 0.0
        %v317 = vand.u32 %v216, 4294901760
        %v318 = vsub.f32 %v216, %v317
        %v319 = vand.u32 %v318, 4294901760
        %v320 = vsub.f32 %v318, %v319
        %v321 = vand.u32 %v320, 4294901760
        %322 = vmatpush1.msra.mxu0 %v321
        %323 = vmatprep.subr.mxu0 0.0
        %v324 = vand.u32 %v215, 4294901760
        %v325 = vsub.f32 %v215, %v324
        %v326 = vand.u32 %v325, 4294901760
        %v327 = vsub.f32 %v325, %v326
        %v328 = vand.u32 %v327, 4294901760
        %329 = vmatpush1.msra.mxu0 %v328
        %330 = vmatprep.subr.mxu0 0.0
        %v331 = vand.u32 %v214, 4294901760
        %v332 = vsub.f32 %v214, %v331
        %v333 = vand.u32 %v332, 4294901760
        %v334 = vsub.f32 %v332, %v333
        %v335 = vand.u32 %v334, 4294901760
        %336 = vmatpush1.msra.mxu0 %v335
        %337 = vmatprep.subr.mxu0 0.0
        %v338 = vand.u32 %v213, 4294901760
        %v339 = vsub.f32 %v213, %v338
        %v340 = vand.u32 %v339, 4294901760
        %v341 = vsub.f32 %v339, %v340
        %v342 = vand.u32 %v341, 4294901760
        %343 = vmatpush1.msra.mxu0 %v342
        %344 = vmatprep.subr.mxu0 0.0
        %v345 = vand.u32 %v212, 4294901760
        %v346 = vsub.f32 %v212, %v345
        %v347 = vand.u32 %v346, 4294901760
        %v348 = vsub.f32 %v346, %v347
        %v349 = vand.u32 %v348, 4294901760
        %350 = vmatpush1.msra.mxu0 %v349
        %351 = vmatprep.subr.mxu0 0.0
        %v352 = vand.u32 %v211, 4294901760
        %v353 = vsub.f32 %v211, %v352
        %v354 = vand.u32 %v353, 4294901760
        %v355 = vsub.f32 %v353, %v354
        %v356 = vand.u32 %v355, 4294901760
        %357 = vmatpush1.msra.mxu0 %v356
        %358 = vmatprep.subr.mxu0 0.0
        %v359 = vand.u32 %v210, 4294901760
        %v360 = vsub.f32 %v210, %v359
        %v361 = vand.u32 %v360, 4294901760
        %v362 = vsub.f32 %v360, %v361
        %v363 = vand.u32 %v362, 4294901760
        %364 = vmatpush1.msra.mxu0 %v363
        %365 = vmatprep.subr.mxu0 0.0
        %v366 = vand.u32 %v209, 4294901760
        %v367 = vsub.f32 %v209, %v366
        %v368 = vand.u32 %v367, 4294901760
        %v369 = vsub.f32 %v367, %v368
        %v370 = vand.u32 %v369, 4294901760
        %371 = vmatpush1.msra.mxu0 %v370
        %372 = vmatprep.subr.mxu0 0.0
        %v373 = vand.u32 %v208, 4294901760
        %v374 = vsub.f32 %v208, %v373
        %v375 = vand.u32 %v374, 4294901760
        %v376 = vsub.f32 %v374, %v375
        %v377 = vand.u32 %v376, 4294901760
        %378 = vmatpush1.msra.mxu0 %v377
        %379 = vmatprep.subr.mxu0 0.0
        %v380 = vand.u32 %v207, 4294901760
        %v381 = vsub.f32 %v207, %v380
        %v382 = vand.u32 %v381, 4294901760
        %v383 = vsub.f32 %v381, %v382
        %v384 = vand.u32 %v383, 4294901760
        %385 = vmatpush1.msra.mxu0 %v384
        %386 = vmatprep.subr.mxu0 0.0
        %v387 = vand.u32 %v206, 4294901760
        %v388 = vsub.f32 %v206, %v387
        %v389 = vand.u32 %v388, 4294901760
        %v390 = vsub.f32 %v388, %v389
        %v391 = vand.u32 %v390, 4294901760
        %392 = vmatpush1.msra.mxu0 %v391
        %393 = vmatprep.subr.mxu0 0.0
        %v394 = vand.u32 %v205, 4294901760
        %v395 = vsub.f32 %v205, %v394
        %v396 = vand.u32 %v395, 4294901760
        %v397 = vsub.f32 %v395, %v396
        %v398 = vand.u32 %v397, 4294901760
        %399 = vmatpush1.msra.mxu0 %v398
        %400 = vmatprep.subr.mxu0 0.0
        %v401 = vand.u32 %v204, 4294901760
        %v402 = vsub.f32 %v204, %v401
        %v403 = vand.u32 %v402, 4294901760
        %v404 = vsub.f32 %v402, %v403
        %v405 = vand.u32 %v404, 4294901760
        %406 = vmatpush1.msra.mxu0 %v405
        %407 = vmatprep.subr.mxu0 0.0
        %v408 = vand.u32 %v203, 4294901760
        %v409 = vsub.f32 %v203, %v408
        %v410 = vand.u32 %v409, 4294901760
        %v411 = vsub.f32 %v409, %v410
        %v412 = vand.u32 %v411, 4294901760
        %413 = vmatpush1.msra.mxu0 %v412
        %414 = vmatprep.subr.mxu0 0.0
        %v415 = vand.u32 %v202, 4294901760
        %v416 = vsub.f32 %v202, %v415
        %v417 = vand.u32 %v416, 4294901760
        %v418 = vsub.f32 %v416, %v417
        %v419 = vand.u32 %v418, 4294901760
        %420 = vmatpush1.msra.mxu0 %v419
        %421 = vmatprep.subr.mxu0 0.0
        %422 = vmatpush2.msra.mxu0 0.0
        %423 = vmatprep.subr.mxu0 0.0
        %424 = vmatpush2.msra.mxu0 0.0
        %425 = vmatprep.subr.mxu0 0.0
        %426 = vmatpush2.msra.mxu0 0.0
        %427 = vmatprep.subr.mxu0 0.0
        %428 = vmatpush2.msra.mxu0 0.0
        %429 = vmatprep.subr.mxu0 0.0
        %430 = vmatpush2.msra.mxu0 0.0
        %431 = vmatprep.subr.mxu0 0.0
        %432 = vmatpush2.msra.mxu0 0.0
        %433 = vmatprep.subr.mxu0 0.0
        %434 = vmatpush2.msra.mxu0 0.0
        %435 = vmatprep.subr.mxu0 0.0
        %436 = vmatpush2.msra.mxu0 0.0
        %437 = vmatprep.subr.mxu0 0.0
        %438 = vmatpush2.msra.mxu0 0.0
        %439 = vmatprep.subr.mxu0 0.0
        %440 = vmatpush2.msra.mxu0 0.0
        %441 = vmatprep.subr.mxu0 0.0
        %442 = vmatpush2.msra.mxu0 0.0
        %443 = vmatprep.subr.mxu0 0.0
        %444 = vmatpush2.msra.mxu0 0.0
        %445 = vmatprep.subr.mxu0 0.0
        %446 = vmatpush2.msra.mxu0 0.0
        %447 = vmatprep.subr.mxu0 0.0
        %448 = vmatpush2.msra.mxu0 0.0
        %449 = vmatprep.subr.mxu0 0.0
        %450 = vmatpush2.msra.mxu0 0.0
        %451 = vmatprep.subr.mxu0 0.0
        %452 = vmatpush2.msra.mxu0 0.0
        %453 = vmatprep.mubr.f32.mxu0 0.0
        %v454 = vand.u32 %v201, 4294901760
        %455 = vmatmul.mubr.f32.gmra.mxu0 %v454
        %v456 = vpop.f32.mrf.mxu0
        %v457 = vadd.f32 %v306, %v456
        %v458 = vpop.f32.mrf.mxu0
        %459 = vdwg.mxu0
        %460 = vmatprep.subr.mxu0 0.0
        %v461 = vand.u32 %v217, 4294901760
        %v462 = vsub.f32 %v217, %v461
        %463 = vmatpush1.msra.mxu0 %v462
        %464 = vmatprep.subr.mxu0 0.0
        %v465 = vand.u32 %v216, 4294901760
        %v466 = vsub.f32 %v216, %v465
        %467 = vmatpush1.msra.mxu0 %v466
        %468 = vmatprep.subr.mxu0 0.0
        %v469 = vand.u32 %v215, 4294901760
        %v470 = vsub.f32 %v215, %v469
        %471 = vmatpush1.msra.mxu0 %v470
        %472 = vmatprep.subr.mxu0 0.0
        %v473 = vand.u32 %v214, 4294901760
        %v474 = vsub.f32 %v214, %v473
        %475 = vmatpush1.msra.mxu0 %v474
        %476 = vmatprep.subr.mxu0 0.0
        %v477 = vand.u32 %v213, 4294901760
        %v478 = vsub.f32 %v213, %v477
        %479 = vmatpush1.msra.mxu0 %v478
        %480 = vmatprep.subr.mxu0 0.0
        %v481 = vand.u32 %v212, 4294901760
        %v482 = vsub.f32 %v212, %v481
        %483 = vmatpush1.msra.mxu0 %v482
        %484 = vmatprep.subr.mxu0 0.0
        %v485 = vand.u32 %v211, 4294901760
        %v486 = vsub.f32 %v211, %v485
        %487 = vmatpush1.msra.mxu0 %v486
        %488 = vmatprep.subr.mxu0 0.0
        %v489 = vand.u32 %v210, 4294901760
        %v490 = vsub.f32 %v210, %v489
        %491 = vmatpush1.msra.mxu0 %v490
        %492 = vmatprep.subr.mxu0 0.0
        %v493 = vand.u32 %v209, 4294901760
        %v494 = vsub.f32 %v209, %v493
        %495 = vmatpush1.msra.mxu0 %v494
        %496 = vmatprep.subr.mxu0 0.0
        %v497 = vand.u32 %v208, 4294901760
        %v498 = vsub.f32 %v208, %v497
        %499 = vmatpush1.msra.mxu0 %v498
        %500 = vmatprep.subr.mxu0 0.0
        %v501 = vand.u32 %v207, 4294901760
        %v502 = vsub.f32 %v207, %v501
        %503 = vmatpush1.msra.mxu0 %v502
        %504 = vmatprep.subr.mxu0 0.0
        %v505 = vand.u32 %v206, 4294901760
        %v506 = vsub.f32 %v206, %v505
        %507 = vmatpush1.msra.mxu0 %v506
        %508 = vmatprep.subr.mxu0 0.0
        %v509 = vand.u32 %v205, 4294901760
        %v510 = vsub.f32 %v205, %v509
        %511 = vmatpush1.msra.mxu0 %v510
        %512 = vmatprep.subr.mxu0 0.0
        %v513 = vand.u32 %v204, 4294901760
        %v514 = vsub.f32 %v204, %v513
        %515 = vmatpush1.msra.mxu0 %v514
        %516 = vmatprep.subr.mxu0 0.0
        %v517 = vand.u32 %v203, 4294901760
        %v518 = vsub.f32 %v203, %v517
        %519 = vmatpush1.msra.mxu0 %v518
        %520 = vmatprep.subr.mxu0 0.0
        %v521 = vand.u32 %v202, 4294901760
        %v522 = vsub.f32 %v202, %v521
        %523 = vmatpush1.msra.mxu0 %v522
        %524 = vmatprep.subr.mxu0 0.0
        %525 = vmatpush2.msra.mxu0 0.0
        %526 = vmatprep.subr.mxu0 0.0
        %527 = vmatpush2.msra.mxu0 0.0
        %528 = vmatprep.subr.mxu0 0.0
        %529 = vmatpush2.msra.mxu0 0.0
        %530 = vmatprep.subr.mxu0 0.0
        %531 = vmatpush2.msra.mxu0 0.0
        %532 = vmatprep.subr.mxu0 0.0
        %533 = vmatpush2.msra.mxu0 0.0
        %534 = vmatprep.subr.mxu0 0.0
        %535 = vmatpush2.msra.mxu0 0.0
        %536 = vmatprep.subr.mxu0 0.0
        %537 = vmatpush2.msra.mxu0 0.0
        %538 = vmatprep.subr.mxu0 0.0
        %539 = vmatpush2.msra.mxu0 0.0
        %540 = vmatprep.subr.mxu0 0.0
        %541 = vmatpush2.msra.mxu0 0.0
        %542 = vmatprep.subr.mxu0 0.0
        %543 = vmatpush2.msra.mxu0 0.0
        %544 = vmatprep.subr.mxu0 0.0
        %545 = vmatpush2.msra.mxu0 0.0
        %546 = vmatprep.subr.mxu0 0.0
        %547 = vmatpush2.msra.mxu0 0.0
        %548 = vmatprep.subr.mxu0 0.0
        %549 = vmatpush2.msra.mxu0 0.0
        %550 = vmatprep.subr.mxu0 0.0
        %551 = vmatpush2.msra.mxu0 0.0
        %552 = vmatprep.subr.mxu0 0.0
        %553 = vmatpush2.msra.mxu0 0.0
        %554 = vmatprep.subr.mxu0 0.0
        %555 = vmatpush2.msra.mxu0 0.0
        %556 = vmatprep.mubr.f32.mxu0 0.0
        %v557 = vand.u32 %v201, 4294901760
        %v558 = vsub.f32 %v201, %v557
        %559 = vmatmul.mubr.f32.gmra.mxu0 %v558
        %v560 = vpop.f32.mrf.mxu0
        %v561 = vadd.f32 %v457, %v560
        %v562 = vpop.f32.mrf.mxu0
        %563 = vdwg.mxu0
        %564 = vmatprep.subr.mxu0 0.0
        %v565 = vand.u32 %v217, 4294901760
        %566 = vmatpush1.msra.mxu0 %v565
        %567 = vmatprep.subr.mxu0 0.0
        %v568 = vand.u32 %v216, 4294901760
        %569 = vmatpush1.msra.mxu0 %v568
        %570 = vmatprep.subr.mxu0 0.0
        %v571 = vand.u32 %v215, 4294901760
        %572 = vmatpush1.msra.mxu0 %v571
        %573 = vmatprep.subr.mxu0 0.0
        %v574 = vand.u32 %v214, 4294901760
        %575 = vmatpush1.msra.mxu0 %v574
        %576 = vmatprep.subr.mxu0 0.0
        %v577 = vand.u32 %v213, 4294901760
        %578 = vmatpush1.msra.mxu0 %v577
        %579 = vmatprep.subr.mxu0 0.0
        %v580 = vand.u32 %v212, 4294901760
        %581 = vmatpush1.msra.mxu0 %v580
        %582 = vmatprep.subr.mxu0 0.0
        %v583 = vand.u32 %v211, 4294901760
        %584 = vmatpush1.msra.mxu0 %v583
        %585 = vmatprep.subr.mxu0 0.0
        %v586 = vand.u32 %v210, 4294901760
        %587 = vmatpush1.msra.mxu0 %v586
        %588 = vmatprep.subr.mxu0 0.0
        %v589 = vand.u32 %v209, 4294901760
        %590 = vmatpush1.msra.mxu0 %v589
        %591 = vmatprep.subr.mxu0 0.0
        %v592 = vand.u32 %v208, 4294901760
        %593 = vmatpush1.msra.mxu0 %v592
        %594 = vmatprep.subr.mxu0 0.0
        %v595 = vand.u32 %v207, 4294901760
        %596 = vmatpush1.msra.mxu0 %v595
        %597 = vmatprep.subr.mxu0 0.0
        %v598 = vand.u32 %v206, 4294901760
        %599 = vmatpush1.msra.mxu0 %v598
        %600 = vmatprep.subr.mxu0 0.0
        %v601 = vand.u32 %v205, 4294901760
        %602 = vmatpush1.msra.mxu0 %v601
        %603 = vmatprep.subr.mxu0 0.0
        %v604 = vand.u32 %v204, 4294901760
        %605 = vmatpush1.msra.mxu0 %v604
        %606 = vmatprep.subr.mxu0 0.0
        %v607 = vand.u32 %v203, 4294901760
        %608 = vmatpush1.msra.mxu0 %v607
        %609 = vmatprep.subr.mxu0 0.0
        %v610 = vand.u32 %v202, 4294901760
        %611 = vmatpush1.msra.mxu0 %v610
        %612 = vmatprep.subr.mxu0 0.0
        %613 = vmatpush2.msra.mxu0 0.0
        %614 = vmatprep.subr.mxu0 0.0
        %615 = vmatpush2.msra.mxu0 0.0
        %616 = vmatprep.subr.mxu0 0.0
        %617 = vmatpush2.msra.mxu0 0.0
        %618 = vmatprep.subr.mxu0 0.0
        %619 = vmatpush2.msra.mxu0 0.0
        %620 = vmatprep.subr.mxu0 0.0
        %621 = vmatpush2.msra.mxu0 0.0
        %622 = vmatprep.subr.mxu0 0.0
        %623 = vmatpush2.msra.mxu0 0.0
        %624 = vmatprep.subr.mxu0 0.0
        %625 = vmatpush2.msra.mxu0 0.0
        %626 = vmatprep.subr.mxu0 0.0
        %627 = vmatpush2.msra.mxu0 0.0
        %628 = vmatprep.subr.mxu0 0.0
        %629 = vmatpush2.msra.mxu0 0.0
        %630 = vmatprep.subr.mxu0 0.0
        %631 = vmatpush2.msra.mxu0 0.0
        %632 = vmatprep.subr.mxu0 0.0
        %633 = vmatpush2.msra.mxu0 0.0
        %634 = vmatprep.subr.mxu0 0.0
        %635 = vmatpush2.msra.mxu0 0.0
        %636 = vmatprep.subr.mxu0 0.0
        %637 = vmatpush2.msra.mxu0 0.0
        %638 = vmatprep.subr.mxu0 0.0
        %639 = vmatpush2.msra.mxu0 0.0
        %640 = vmatprep.subr.mxu0 0.0
        %641 = vmatpush2.msra.mxu0 0.0
        %642 = vmatprep.subr.mxu0 0.0
        %643 = vmatpush2.msra.mxu0 0.0
        %644 = vmatprep.mubr.f32.mxu0 0.0
        %v645 = vand.u32 %v201, 4294901760
        %v646 = vsub.f32 %v201, %v645
        %v647 = vand.u32 %v646, 4294901760
        %648 = vmatmul.mubr.f32.gmra.mxu0 %v647
        %v649 = vpop.f32.mrf.mxu0
        %v650 = vadd.f32 %v561, %v649
        %v651 = vpop.f32.mrf.mxu0
        %652 = vdwg.mxu0
        %653 = vmatprep.subr.mxu0 0.0
        %v654 = vand.u32 %v217, 4294901760
        %v655 = vsub.f32 %v217, %v654
        %v656 = vand.u32 %v655, 4294901760
        %657 = vmatpush1.msra.mxu0 %v656
        %658 = vmatprep.subr.mxu0 0.0
        %v659 = vand.u32 %v216, 4294901760
        %v660 = vsub.f32 %v216, %v659
        %v661 = vand.u32 %v660, 4294901760
        %662 = vmatpush1.msra.mxu0 %v661
        %663 = vmatprep.subr.mxu0 0.0
        %v664 = vand.u32 %v215, 4294901760
        %v665 = vsub.f32 %v215, %v664
        %v666 = vand.u32 %v665, 4294901760
        %667 = vmatpush1.msra.mxu0 %v666
        %668 = vmatprep.subr.mxu0 0.0
        %v669 = vand.u32 %v214, 4294901760
        %v670 = vsub.f32 %v214, %v669
        %v671 = vand.u32 %v670, 4294901760
        %672 = vmatpush1.msra.mxu0 %v671
        %673 = vmatprep.subr.mxu0 0.0
        %v674 = vand.u32 %v213, 4294901760
        %v675 = vsub.f32 %v213, %v674
        %v676 = vand.u32 %v675, 4294901760
        %677 = vmatpush1.msra.mxu0 %v676
        %678 = vmatprep.subr.mxu0 0.0
        %v679 = vand.u32 %v212, 4294901760
        %v680 = vsub.f32 %v212, %v679
        %v681 = vand.u32 %v680, 4294901760
        %682 = vmatpush1.msra.mxu0 %v681
        %683 = vmatprep.subr.mxu0 0.0
        %v684 = vand.u32 %v211, 4294901760
        %v685 = vsub.f32 %v211, %v684
        %v686 = vand.u32 %v685, 4294901760
        %687 = vmatpush1.msra.mxu0 %v686
        %688 = vmatprep.subr.mxu0 0.0
        %v689 = vand.u32 %v210, 4294901760
        %v690 = vsub.f32 %v210, %v689
        %v691 = vand.u32 %v690, 4294901760
        %692 = vmatpush1.msra.mxu0 %v691
        %693 = vmatprep.subr.mxu0 0.0
        %v694 = vand.u32 %v209, 4294901760
        %v695 = vsub.f32 %v209, %v694
        %v696 = vand.u32 %v695, 4294901760
        %697 = vmatpush1.msra.mxu0 %v696
        %698 = vmatprep.subr.mxu0 0.0
        %v699 = vand.u32 %v208, 4294901760
        %v700 = vsub.f32 %v208, %v699
        %v701 = vand.u32 %v700, 4294901760
        %702 = vmatpush1.msra.mxu0 %v701
        %703 = vmatprep.subr.mxu0 0.0
        %v704 = vand.u32 %v207, 4294901760
        %v705 = vsub.f32 %v207, %v704
        %v706 = vand.u32 %v705, 4294901760
        %707 = vmatpush1.msra.mxu0 %v706
        %708 = vmatprep.subr.mxu0 0.0
        %v709 = vand.u32 %v206, 4294901760
        %v710 = vsub.f32 %v206, %v709
        %v711 = vand.u32 %v710, 4294901760
        %712 = vmatpush1.msra.mxu0 %v711
        %713 = vmatprep.subr.mxu0 0.0
        %v714 = vand.u32 %v205, 4294901760
        %v715 = vsub.f32 %v205, %v714
        %v716 = vand.u32 %v715, 4294901760
        %717 = vmatpush1.msra.mxu0 %v716
        %718 = vmatprep.subr.mxu0 0.0
        %v719 = vand.u32 %v204, 4294901760
        %v720 = vsub.f32 %v204, %v719
        %v721 = vand.u32 %v720, 4294901760
        %722 = vmatpush1.msra.mxu0 %v721
        %723 = vmatprep.subr.mxu0 0.0
        %v724 = vand.u32 %v203, 4294901760
        %v725 = vsub.f32 %v203, %v724
        %v726 = vand.u32 %v725, 4294901760
        %727 = vmatpush1.msra.mxu0 %v726
        %728 = vmatprep.subr.mxu0 0.0
        %v729 = vand.u32 %v202, 4294901760
        %v730 = vsub.f32 %v202, %v729
        %v731 = vand.u32 %v730, 4294901760
        %732 = vmatpush1.msra.mxu0 %v731
        %733 = vmatprep.subr.mxu0 0.0
        %734 = vmatpush2.msra.mxu0 0.0
        %735 = vmatprep.subr.mxu0 0.0
        %736 = vmatpush2.msra.mxu0 0.0
        %737 = vmatprep.subr.mxu0 0.0
        %738 = vmatpush2.msra.mxu0 0.0
        %739 = vmatprep.subr.mxu0 0.0
        %740 = vmatpush2.msra.mxu0 0.0
        %741 = vmatprep.subr.mxu0 0.0
        %742 = vmatpush2.msra.mxu0 0.0
        %743 = vmatprep.subr.mxu0 0.0
        %744 = vmatpush2.msra.mxu0 0.0
        %745 = vmatprep.subr.mxu0 0.0
        %746 = vmatpush2.msra.mxu0 0.0
        %747 = vmatprep.subr.mxu0 0.0
        %748 = vmatpush2.msra.mxu0 0.0
        %749 = vmatprep.subr.mxu0 0.0
        %750 = vmatpush2.msra.mxu0 0.0
        %751 = vmatprep.subr.mxu0 0.0
        %752 = vmatpush2.msra.mxu0 0.0
        %753 = vmatprep.subr.mxu0 0.0
        %754 = vmatpush2.msra.mxu0 0.0
        %755 = vmatprep.subr.mxu0 0.0
        %756 = vmatpush2.msra.mxu0 0.0
        %757 = vmatprep.subr.mxu0 0.0
        %758 = vmatpush2.msra.mxu0 0.0
        %759 = vmatprep.subr.mxu0 0.0
        %760 = vmatpush2.msra.mxu0 0.0
        %761 = vmatprep.subr.mxu0 0.0
        %762 = vmatpush2.msra.mxu0 0.0
        %763 = vmatprep.subr.mxu0 0.0
        %764 = vmatpush2.msra.mxu0 0.0
        %765 = vmatprep.mubr.f32.mxu0 0.0
        %v766 = vand.u32 %v201, 4294901760
        %767 = vmatmul.mubr.f32.gmra.mxu0 %v766
        %v768 = vpop.f32.mrf.mxu0
        %v769 = vadd.f32 %v650, %v768
        %v770 = vpop.f32.mrf.mxu0
        %771 = vdwg.mxu0
        %772 = vmatprep.subr.mxu0 0.0
        %v773 = vand.u32 %v217, 4294901760
        %774 = vmatpush1.msra.mxu0 %v773
        %775 = vmatprep.subr.mxu0 0.0
        %v776 = vand.u32 %v216, 4294901760
        %777 = vmatpush1.msra.mxu0 %v776
        %778 = vmatprep.subr.mxu0 0.0
        %v779 = vand.u32 %v215, 4294901760
        %780 = vmatpush1.msra.mxu0 %v779
        %781 = vmatprep.subr.mxu0 0.0
        %v782 = vand.u32 %v214, 4294901760
        %783 = vmatpush1.msra.mxu0 %v782
        %784 = vmatprep.subr.mxu0 0.0
        %v785 = vand.u32 %v213, 4294901760
        %786 = vmatpush1.msra.mxu0 %v785
        %787 = vmatprep.subr.mxu0 0.0
        %v788 = vand.u32 %v212, 4294901760
        %789 = vmatpush1.msra.mxu0 %v788
        %790 = vmatprep.subr.mxu0 0.0
        %v791 = vand.u32 %v211, 4294901760
        %792 = vmatpush1.msra.mxu0 %v791
        %793 = vmatprep.subr.mxu0 0.0
        %v794 = vand.u32 %v210, 4294901760
        %795 = vmatpush1.msra.mxu0 %v794
        %796 = vmatprep.subr.mxu0 0.0
        %v797 = vand.u32 %v209, 4294901760
        %798 = vmatpush1.msra.mxu0 %v797
        %799 = vmatprep.subr.mxu0 0.0
        %v800 = vand.u32 %v208, 4294901760
        %801 = vmatpush1.msra.mxu0 %v800
        %802 = vmatprep.subr.mxu0 0.0
        %v803 = vand.u32 %v207, 4294901760
        %804 = vmatpush1.msra.mxu0 %v803
        %805 = vmatprep.subr.mxu0 0.0
        %v806 = vand.u32 %v206, 4294901760
        %807 = vmatpush1.msra.mxu0 %v806
        %808 = vmatprep.subr.mxu0 0.0
        %v809 = vand.u32 %v205, 4294901760
        %810 = vmatpush1.msra.mxu0 %v809
        %811 = vmatprep.subr.mxu0 0.0
        %v812 = vand.u32 %v204, 4294901760
        %813 = vmatpush1.msra.mxu0 %v812
        %814 = vmatprep.subr.mxu0 0.0
        %v815 = vand.u32 %v203, 4294901760
        %816 = vmatpush1.msra.mxu0 %v815
        %817 = vmatprep.subr.mxu0 0.0
        %v818 = vand.u32 %v202, 4294901760
        %819 = vmatpush1.msra.mxu0 %v818
        %820 = vmatprep.subr.mxu0 0.0
        %821 = vmatpush2.msra.mxu0 0.0
        %822 = vmatprep.subr.mxu0 0.0
        %823 = vmatpush2.msra.mxu0 0.0
        %824 = vmatprep.subr.mxu0 0.0
        %825 = vmatpush2.msra.mxu0 0.0
        %826 = vmatprep.subr.mxu0 0.0
        %827 = vmatpush2.msra.mxu0 0.0
        %828 = vmatprep.subr.mxu0 0.0
        %829 = vmatpush2.msra.mxu0 0.0
        %830 = vmatprep.subr.mxu0 0.0
        %831 = vmatpush2.msra.mxu0 0.0
        %832 = vmatprep.subr.mxu0 0.0
        %833 = vmatpush2.msra.mxu0 0.0
        %834 = vmatprep.subr.mxu0 0.0
        %835 = vmatpush2.msra.mxu0 0.0
        %836 = vmatprep.subr.mxu0 0.0
        %837 = vmatpush2.msra.mxu0 0.0
        %838 = vmatprep.subr.mxu0 0.0
        %839 = vmatpush2.msra.mxu0 0.0
        %840 = vmatprep.subr.mxu0 0.0
        %841 = vmatpush2.msra.mxu0 0.0
        %842 = vmatprep.subr.mxu0 0.0
        %843 = vmatpush2.msra.mxu0 0.0
        %844 = vmatprep.subr.mxu0 0.0
        %845 = vmatpush2.msra.mxu0 0.0
        %846 = vmatprep.subr.mxu0 0.0
        %847 = vmatpush2.msra.mxu0 0.0
        %848 = vmatprep.subr.mxu0 0.0
        %849 = vmatpush2.msra.mxu0 0.0
        %850 = vmatprep.subr.mxu0 0.0
        %851 = vmatpush2.msra.mxu0 0.0
        %852 = vmatprep.mubr.f32.mxu0 0.0
        %v853 = vand.u32 %v201, 4294901760
        %854 = vmatmul.mubr.f32.gmra.mxu0 %v853
        %v855 = vpop.f32.mrf.mxu0
        %v856 = vadd.f32 %v769, %v855
        %v857 = vpop.f32.mrf.mxu0
        %858 = vdwg.mxu0
        %v859 = vmul.f32 %v856, 0.03125
        %v860 = vsub.f32 %v201, %v859
        %v861 = vmul.f32 %v860, %v860
        %862 = vmatprep.subr.mxu0 0.0
        %v863 = vand.u32 %v217, 4294901760
        %864 = vmatpush1.msra.mxu0 %v863
        %865 = vmatprep.subr.mxu0 0.0
        %v866 = vand.u32 %v216, 4294901760
        %867 = vmatpush1.msra.mxu0 %v866
        %868 = vmatprep.subr.mxu0 0.0
        %v869 = vand.u32 %v215, 4294901760
        %870 = vmatpush1.msra.mxu0 %v869
        %871 = vmatprep.subr.mxu0 0.0
        %v872 = vand.u32 %v214, 4294901760
        %873 = vmatpush1.msra.mxu0 %v872
        %874 = vmatprep.subr.mxu0 0.0
        %v875 = vand.u32 %v213, 4294901760
        %876 = vmatpush1.msra.mxu0 %v875
        %877 = vmatprep.subr.mxu0 0.0
        %v878 = vand.u32 %v212, 4294901760
        %879 = vmatpush1.msra.mxu0 %v878
        %880 = vmatprep.subr.mxu0 0.0
        %v881 = vand.u32 %v211, 4294901760
        %882 = vmatpush1.msra.mxu0 %v881
        %883 = vmatprep.subr.mxu0 0.0
        %v884 = vand.u32 %v210, 4294901760
        %885 = vmatpush1.msra.mxu0 %v884
        %886 = vmatprep.subr.mxu0 0.0
        %v887 = vand.u32 %v209, 4294901760
        %888 = vmatpush1.msra.mxu0 %v887
        %889 = vmatprep.subr.mxu0 0.0
        %v890 = vand.u32 %v208, 4294901760
        %891 = vmatpush1.msra.mxu0 %v890
        %892 = vmatprep.subr.mxu0 0.0
        %v893 = vand.u32 %v207, 4294901760
        %894 = vmatpush1.msra.mxu0 %v893
        %895 = vmatprep.subr.mxu0 0.0
        %v896 = vand.u32 %v206, 4294901760
        %897 = vmatpush1.msra.mxu0 %v896
        %898 = vmatprep.subr.mxu0 0.0
        %v899 = vand.u32 %v205, 4294901760
        %900 = vmatpush1.msra.mxu0 %v899
        %901 = vmatprep.subr.mxu0 0.0
        %v902 = vand.u32 %v204, 4294901760
        %903 = vmatpush1.msra.mxu0 %v902
        %904 = vmatprep.subr.mxu0 0.0
        %v905 = vand.u32 %v203, 4294901760
        %906 = vmatpush1.msra.mxu0 %v905
        %907 = vmatprep.subr.mxu0 0.0
        %v908 = vand.u32 %v202, 4294901760
        %909 = vmatpush1.msra.mxu0 %v908
        %910 = vmatprep.subr.mxu0 0.0
        %911 = vmatpush2.msra.mxu0 0.0
        %912 = vmatprep.subr.mxu0 0.0
        %913 = vmatpush2.msra.mxu0 0.0
        %914 = vmatprep.subr.mxu0 0.0
        %915 = vmatpush2.msra.mxu0 0.0
        %916 = vmatprep.subr.mxu0 0.0
        %917 = vmatpush2.msra.mxu0 0.0
        %918 = vmatprep.subr.mxu0 0.0
        %919 = vmatpush2.msra.mxu0 0.0
        %920 = vmatprep.subr.mxu0 0.0
        %921 = vmatpush2.msra.mxu0 0.0
        %922 = vmatprep.subr.mxu0 0.0
        %923 = vmatpush2.msra.mxu0 0.0
        %924 = vmatprep.subr.mxu0 0.0
        %925 = vmatpush2.msra.mxu0 0.0
        %926 = vmatprep.subr.mxu0 0.0
        %927 = vmatpush2.msra.mxu0 0.0
        %928 = vmatprep.subr.mxu0 0.0
        %929 = vmatpush2.msra.mxu0 0.0
        %930 = vmatprep.subr.mxu0 0.0
        %931 = vmatpush2.msra.mxu0 0.0
        %932 = vmatprep.subr.mxu0 0.0
        %933 = vmatpush2.msra.mxu0 0.0
        %934 = vmatprep.subr.mxu0 0.0
        %935 = vmatpush2.msra.mxu0 0.0
        %936 = vmatprep.subr.mxu0 0.0
        %937 = vmatpush2.msra.mxu0 0.0
        %938 = vmatprep.subr.mxu0 0.0
        %939 = vmatpush2.msra.mxu0 0.0
        %940 = vmatprep.subr.mxu0 0.0
        %941 = vmatpush2.msra.mxu0 0.0
        %942 = vmatprep.mubr.f32.mxu0 0.0
        %v943 = vand.u32 %v861, 4294901760
        %v944 = vsub.f32 %v861, %v943
        %v945 = vand.u32 %v944, 4294901760
        %v946 = vsub.f32 %v944, %v945
        %v947 = vand.u32 %v946, 4294901760
        %948 = vmatmul.mubr.f32.gmra.mxu0 %v947
        %v949 = vpop.f32.mrf.mxu0
        %v950 = vadd.f32 0.0, %v949
        %v951 = vpop.f32.mrf.mxu0
        %952 = vdwg.mxu0
        %953 = vmatprep.subr.mxu0 0.0
        %v954 = vand.u32 %v217, 4294901760
        %v955 = vsub.f32 %v217, %v954
        %v956 = vand.u32 %v955, 4294901760
        %v957 = vsub.f32 %v955, %v956
        %v958 = vand.u32 %v957, 4294901760
        %959 = vmatpush1.msra.mxu0 %v958
        %960 = vmatprep.subr.mxu0 0.0
        %v961 = vand.u32 %v216, 4294901760
        %v962 = vsub.f32 %v216, %v961
        %v963 = vand.u32 %v962, 4294901760
        %v964 = vsub.f32 %v962, %v963
        %v965 = vand.u32 %v964, 4294901760
        %966 = vmatpush1.msra.mxu0 %v965
        %967 = vmatprep.subr.mxu0 0.0
        %v968 = vand.u32 %v215, 4294901760
        %v969 = vsub.f32 %v215, %v968
        %v970 = vand.u32 %v969, 4294901760
        %v971 = vsub.f32 %v969, %v970
        %v972 = vand.u32 %v971, 4294901760
        %973 = vmatpush1.msra.mxu0 %v972
        %974 = vmatprep.subr.mxu0 0.0
        %v975 = vand.u32 %v214, 4294901760
        %v976 = vsub.f32 %v214, %v975
        %v977 = vand.u32 %v976, 4294901760
        %v978 = vsub.f32 %v976, %v977
        %v979 = vand.u32 %v978, 4294901760
        %980 = vmatpush1.msra.mxu0 %v979
        %981 = vmatprep.subr.mxu0 0.0
        %v982 = vand.u32 %v213, 4294901760
        %v983 = vsub.f32 %v213, %v982
        %v984 = vand.u32 %v983, 4294901760
        %v985 = vsub.f32 %v983, %v984
        %v986 = vand.u32 %v985, 4294901760
        %987 = vmatpush1.msra.mxu0 %v986
        %988 = vmatprep.subr.mxu0 0.0
        %v989 = vand.u32 %v212, 4294901760
        %v990 = vsub.f32 %v212, %v989
        %v991 = vand.u32 %v990, 4294901760
        %v992 = vsub.f32 %v990, %v991
        %v993 = vand.u32 %v992, 4294901760
        %994 = vmatpush1.msra.mxu0 %v993
        %995 = vmatprep.subr.mxu0 0.0
        %v996 = vand.u32 %v211, 4294901760
        %v997 = vsub.f32 %v211, %v996
        %v998 = vand.u32 %v997, 4294901760
        %v999 = vsub.f32 %v997, %v998
        %v1000 = vand.u32 %v999, 4294901760
        %1001 = vmatpush1.msra.mxu0 %v1000
        %1002 = vmatprep.subr.mxu0 0.0
        %v1003 = vand.u32 %v210, 4294901760
        %v1004 = vsub.f32 %v210, %v1003
        %v1005 = vand.u32 %v1004, 4294901760
        %v1006 = vsub.f32 %v1004, %v1005
        %v1007 = vand.u32 %v1006, 4294901760
        %1008 = vmatpush1.msra.mxu0 %v1007
        %1009 = vmatprep.subr.mxu0 0.0
        %v1010 = vand.u32 %v209, 4294901760
        %v1011 = vsub.f32 %v209, %v1010
        %v1012 = vand.u32 %v1011, 4294901760
        %v1013 = vsub.f32 %v1011, %v1012
        %v1014 = vand.u32 %v1013, 4294901760
        %1015 = vmatpush1.msra.mxu0 %v1014
        %1016 = vmatprep.subr.mxu0 0.0
        %v1017 = vand.u32 %v208, 4294901760
        %v1018 = vsub.f32 %v208, %v1017
        %v1019 = vand.u32 %v1018, 4294901760
        %v1020 = vsub.f32 %v1018, %v1019
        %v1021 = vand.u32 %v1020, 4294901760
        %1022 = vmatpush1.msra.mxu0 %v1021
        %1023 = vmatprep.subr.mxu0 0.0
        %v1024 = vand.u32 %v207, 4294901760
        %v1025 = vsub.f32 %v207, %v1024
        %v1026 = vand.u32 %v1025, 4294901760
        %v1027 = vsub.f32 %v1025, %v1026
        %v1028 = vand.u32 %v1027, 4294901760
        %1029 = vmatpush1.msra.mxu0 %v1028
        %1030 = vmatprep.subr.mxu0 0.0
        %v1031 = vand.u32 %v206, 4294901760
        %v1032 = vsub.f32 %v206, %v1031
        %v1033 = vand.u32 %v1032, 4294901760
        %v1034 = vsub.f32 %v1032, %v1033
        %v1035 = vand.u32 %v1034, 4294901760
        %1036 = vmatpush1.msra.mxu0 %v1035
        %1037 = vmatprep.subr.mxu0 0.0
        %v1038 = vand.u32 %v205, 4294901760
        %v1039 = vsub.f32 %v205, %v1038
        %v1040 = vand.u32 %v1039, 4294901760
        %v1041 = vsub.f32 %v1039, %v1040
        %v1042 = vand.u32 %v1041, 4294901760
        %1043 = vmatpush1.msra.mxu0 %v1042
        %1044 = vmatprep.subr.mxu0 0.0
        %v1045 = vand.u32 %v204, 4294901760
        %v1046 = vsub.f32 %v204, %v1045
        %v1047 = vand.u32 %v1046, 4294901760
        %v1048 = vsub.f32 %v1046, %v1047
        %v1049 = vand.u32 %v1048, 4294901760
        %1050 = vmatpush1.msra.mxu0 %v1049
        %1051 = vmatprep.subr.mxu0 0.0
        %v1052 = vand.u32 %v203, 4294901760
        %v1053 = vsub.f32 %v203, %v1052
        %v1054 = vand.u32 %v1053, 4294901760
        %v1055 = vsub.f32 %v1053, %v1054
        %v1056 = vand.u32 %v1055, 4294901760
        %1057 = vmatpush1.msra.mxu0 %v1056
        %1058 = vmatprep.subr.mxu0 0.0
        %v1059 = vand.u32 %v202, 4294901760
        %v1060 = vsub.f32 %v202, %v1059
        %v1061 = vand.u32 %v1060, 4294901760
        %v1062 = vsub.f32 %v1060, %v1061
        %v1063 = vand.u32 %v1062, 4294901760
        %1064 = vmatpush1.msra.mxu0 %v1063
        %1065 = vmatprep.subr.mxu0 0.0
        %1066 = vmatpush2.msra.mxu0 0.0
        %1067 = vmatprep.subr.mxu0 0.0
        %1068 = vmatpush2.msra.mxu0 0.0
        %1069 = vmatprep.subr.mxu0 0.0
        %1070 = vmatpush2.msra.mxu0 0.0
        %1071 = vmatprep.subr.mxu0 0.0
        %1072 = vmatpush2.msra.mxu0 0.0
        %1073 = vmatprep.subr.mxu0 0.0
        %1074 = vmatpush2.msra.mxu0 0.0
        %1075 = vmatprep.subr.mxu0 0.0
        %1076 = vmatpush2.msra.mxu0 0.0
        %1077 = vmatprep.subr.mxu0 0.0
        %1078 = vmatpush2.msra.mxu0 0.0
        %1079 = vmatprep.subr.mxu0 0.0
        %1080 = vmatpush2.msra.mxu0 0.0
        %1081 = vmatprep.subr.mxu0 0.0
        %1082 = vmatpush2.msra.mxu0 0.0
        %1083 = vmatprep.subr.mxu0 0.0
        %1084 = vmatpush2.msra.mxu0 0.0
        %1085 = vmatprep.subr.mxu0 0.0
        %1086 = vmatpush2.msra.mxu0 0.0
        %1087 = vmatprep.subr.mxu0 0.0
        %1088 = vmatpush2.msra.mxu0 0.0
        %1089 = vmatprep.subr.mxu0 0.0
        %1090 = vmatpush2.msra.mxu0 0.0
        %1091 = vmatprep.subr.mxu0 0.0
        %1092 = vmatpush2.msra.mxu0 0.0
        %1093 = vmatprep.subr.mxu0 0.0
        %1094 = vmatpush2.msra.mxu0 0.0
        %1095 = vmatprep.subr.mxu0 0.0
        %1096 = vmatpush2.msra.mxu0 0.0
        %1097 = vmatprep.mubr.f32.mxu0 0.0
        %v1098 = vand.u32 %v861, 4294901760
        %1099 = vmatmul.mubr.f32.gmra.mxu0 %v1098
        %v1100 = vpop.f32.mrf.mxu0
        %v1101 = vadd.f32 %v950, %v1100
        %v1102 = vpop.f32.mrf.mxu0
        %1103 = vdwg.mxu0
        %1104 = vmatprep.subr.mxu0 0.0
        %v1105 = vand.u32 %v217, 4294901760
        %v1106 = vsub.f32 %v217, %v1105
        %1107 = vmatpush1.msra.mxu0 %v1106
        %1108 = vmatprep.subr.mxu0 0.0
        %v1109 = vand.u32 %v216, 4294901760
        %v1110 = vsub.f32 %v216, %v1109
        %1111 = vmatpush1.msra.mxu0 %v1110
        %1112 = vmatprep.subr.mxu0 0.0
        %v1113 = vand.u32 %v215, 4294901760
        %v1114 = vsub.f32 %v215, %v1113
        %1115 = vmatpush1.msra.mxu0 %v1114
        %1116 = vmatprep.subr.mxu0 0.0
        %v1117 = vand.u32 %v214, 4294901760
        %v1118 = vsub.f32 %v214, %v1117
        %1119 = vmatpush1.msra.mxu0 %v1118
        %1120 = vmatprep.subr.mxu0 0.0
        %v1121 = vand.u32 %v213, 4294901760
        %v1122 = vsub.f32 %v213, %v1121
        %1123 = vmatpush1.msra.mxu0 %v1122
        %1124 = vmatprep.subr.mxu0 0.0
        %v1125 = vand.u32 %v212, 4294901760
        %v1126 = vsub.f32 %v212, %v1125
        %1127 = vmatpush1.msra.mxu0 %v1126
        %1128 = vmatprep.subr.mxu0 0.0
        %v1129 = vand.u32 %v211, 4294901760
        %v1130 = vsub.f32 %v211, %v1129
        %1131 = vmatpush1.msra.mxu0 %v1130
        %1132 = vmatprep.subr.mxu0 0.0
        %v1133 = vand.u32 %v210, 4294901760
        %v1134 = vsub.f32 %v210, %v1133
        %1135 = vmatpush1.msra.mxu0 %v1134
        %1136 = vmatprep.subr.mxu0 0.0
        %v1137 = vand.u32 %v209, 4294901760
        %v1138 = vsub.f32 %v209, %v1137
        %1139 = vmatpush1.msra.mxu0 %v1138
        %1140 = vmatprep.subr.mxu0 0.0
        %v1141 = vand.u32 %v208, 4294901760
        %v1142 = vsub.f32 %v208, %v1141
        %1143 = vmatpush1.msra.mxu0 %v1142
        %1144 = vmatprep.subr.mxu0 0.0
        %v1145 = vand.u32 %v207, 4294901760
        %v1146 = vsub.f32 %v207, %v1145
        %1147 = vmatpush1.msra.mxu0 %v1146
        %1148 = vmatprep.subr.mxu0 0.0
        %v1149 = vand.u32 %v206, 4294901760
        %v1150 = vsub.f32 %v206, %v1149
        %1151 = vmatpush1.msra.mxu0 %v1150
        %1152 = vmatprep.subr.mxu0 0.0
        %v1153 = vand.u32 %v205, 4294901760
        %v1154 = vsub.f32 %v205, %v1153
        %1155 = vmatpush1.msra.mxu0 %v1154
        %1156 = vmatprep.subr.mxu0 0.0
        %v1157 = vand.u32 %v204, 4294901760
        %v1158 = vsub.f32 %v204, %v1157
        %1159 = vmatpush1.msra.mxu0 %v1158
        %1160 = vmatprep.subr.mxu0 0.0
        %v1161 = vand.u32 %v203, 4294901760
        %v1162 = vsub.f32 %v203, %v1161
        %1163 = vmatpush1.msra.mxu0 %v1162
        %1164 = vmatprep.subr.mxu0 0.0
        %v1165 = vand.u32 %v202, 4294901760
        %v1166 = vsub.f32 %v202, %v1165
        %1167 = vmatpush1.msra.mxu0 %v1166
        %1168 = vmatprep.subr.mxu0 0.0
        %1169 = vmatpush2.msra.mxu0 0.0
        %1170 = vmatprep.subr.mxu0 0.0
        %1171 = vmatpush2.msra.mxu0 0.0
        %1172 = vmatprep.subr.mxu0 0.0
        %1173 = vmatpush2.msra.mxu0 0.0
        %1174 = vmatprep.subr.mxu0 0.0
        %1175 = vmatpush2.msra.mxu0 0.0
        %1176 = vmatprep.subr.mxu0 0.0
        %1177 = vmatpush2.msra.mxu0 0.0
        %1178 = vmatprep.subr.mxu0 0.0
        %1179 = vmatpush2.msra.mxu0 0.0
        %1180 = vmatprep.subr.mxu0 0.0
        %1181 = vmatpush2.msra.mxu0 0.0
        %1182 = vmatprep.subr.mxu0 0.0
        %1183 = vmatpush2.msra.mxu0 0.0
        %1184 = vmatprep.subr.mxu0 0.0
        %1185 = vmatpush2.msra.mxu0 0.0
        %1186 = vmatprep.subr.mxu0 0.0
        %1187 = vmatpush2.msra.mxu0 0.0
        %1188 = vmatprep.subr.mxu0 0.0
        %1189 = vmatpush2.msra.mxu0 0.0
        %1190 = vmatprep.subr.mxu0 0.0
        %1191 = vmatpush2.msra.mxu0 0.0
        %1192 = vmatprep.subr.mxu0 0.0
        %1193 = vmatpush2.msra.mxu0 0.0
        %1194 = vmatprep.subr.mxu0 0.0
        %1195 = vmatpush2.msra.mxu0 0.0
        %1196 = vmatprep.subr.mxu0 0.0
        %1197 = vmatpush2.msra.mxu0 0.0
        %1198 = vmatprep.subr.mxu0 0.0
        %1199 = vmatpush2.msra.mxu0 0.0
        %1200 = vmatprep.mubr.f32.mxu0 0.0
        %v1201 = vand.u32 %v861, 4294901760
        %v1202 = vsub.f32 %v861, %v1201
        %1203 = vmatmul.mubr.f32.gmra.mxu0 %v1202
        %v1204 = vpop.f32.mrf.mxu0
        %v1205 = vadd.f32 %v1101, %v1204
        %v1206 = vpop.f32.mrf.mxu0
        %1207 = vdwg.mxu0
        %1208 = vmatprep.subr.mxu0 0.0
        %v1209 = vand.u32 %v217, 4294901760
        %1210 = vmatpush1.msra.mxu0 %v1209
        %1211 = vmatprep.subr.mxu0 0.0
        %v1212 = vand.u32 %v216, 4294901760
        %1213 = vmatpush1.msra.mxu0 %v1212
        %1214 = vmatprep.subr.mxu0 0.0
        %v1215 = vand.u32 %v215, 4294901760
        %1216 = vmatpush1.msra.mxu0 %v1215
        %1217 = vmatprep.subr.mxu0 0.0
        %v1218 = vand.u32 %v214, 4294901760
        %1219 = vmatpush1.msra.mxu0 %v1218
        %1220 = vmatprep.subr.mxu0 0.0
        %v1221 = vand.u32 %v213, 4294901760
        %1222 = vmatpush1.msra.mxu0 %v1221
        %1223 = vmatprep.subr.mxu0 0.0
        %v1224 = vand.u32 %v212, 4294901760
        %1225 = vmatpush1.msra.mxu0 %v1224
        %1226 = vmatprep.subr.mxu0 0.0
        %v1227 = vand.u32 %v211, 4294901760
        %1228 = vmatpush1.msra.mxu0 %v1227
        %1229 = vmatprep.subr.mxu0 0.0
        %v1230 = vand.u32 %v210, 4294901760
        %1231 = vmatpush1.msra.mxu0 %v1230
        %1232 = vmatprep.subr.mxu0 0.0
        %v1233 = vand.u32 %v209, 4294901760
        %1234 = vmatpush1.msra.mxu0 %v1233
        %1235 = vmatprep.subr.mxu0 0.0
        %v1236 = vand.u32 %v208, 4294901760
        %1237 = vmatpush1.msra.mxu0 %v1236
        %1238 = vmatprep.subr.mxu0 0.0
        %v1239 = vand.u32 %v207, 4294901760
        %1240 = vmatpush1.msra.mxu0 %v1239
        %1241 = vmatprep.subr.mxu0 0.0
        %v1242 = vand.u32 %v206, 4294901760
        %1243 = vmatpush1.msra.mxu0 %v1242
        %1244 = vmatprep.subr.mxu0 0.0
        %v1245 = vand.u32 %v205, 4294901760
        %1246 = vmatpush1.msra.mxu0 %v1245
        %1247 = vmatprep.subr.mxu0 0.0
        %v1248 = vand.u32 %v204, 4294901760
        %1249 = vmatpush1.msra.mxu0 %v1248
        %1250 = vmatprep.subr.mxu0 0.0
        %v1251 = vand.u32 %v203, 4294901760
        %1252 = vmatpush1.msra.mxu0 %v1251
        %1253 = vmatprep.subr.mxu0 0.0
        %v1254 = vand.u32 %v202, 4294901760
        %1255 = vmatpush1.msra.mxu0 %v1254
        %1256 = vmatprep.subr.mxu0 0.0
        %1257 = vmatpush2.msra.mxu0 0.0
        %1258 = vmatprep.subr.mxu0 0.0
        %1259 = vmatpush2.msra.mxu0 0.0
        %1260 = vmatprep.subr.mxu0 0.0
        %1261 = vmatpush2.msra.mxu0 0.0
        %1262 = vmatprep.subr.mxu0 0.0
        %1263 = vmatpush2.msra.mxu0 0.0
        %1264 = vmatprep.subr.mxu0 0.0
        %1265 = vmatpush2.msra.mxu0 0.0
        %1266 = vmatprep.subr.mxu0 0.0
        %1267 = vmatpush2.msra.mxu0 0.0
        %1268 = vmatprep.subr.mxu0 0.0
        %1269 = vmatpush2.msra.mxu0 0.0
        %1270 = vmatprep.subr.mxu0 0.0
        %1271 = vmatpush2.msra.mxu0 0.0
        %1272 = vmatprep.subr.mxu0 0.0
        %1273 = vmatpush2.msra.mxu0 0.0
        %1274 = vmatprep.subr.mxu0 0.0
        %1275 = vmatpush2.msra.mxu0 0.0
        %1276 = vmatprep.subr.mxu0 0.0
        %1277 = vmatpush2.msra.mxu0 0.0
        %1278 = vmatprep.subr.mxu0 0.0
        %1279 = vmatpush2.msra.mxu0 0.0
        %1280 = vmatprep.subr.mxu0 0.0
        %1281 = vmatpush2.msra.mxu0 0.0
        %1282 = vmatprep.subr.mxu0 0.0
        %1283 = vmatpush2.msra.mxu0 0.0
        %1284 = vmatprep.subr.mxu0 0.0
        %1285 = vmatpush2.msra.mxu0 0.0
        %1286 = vmatprep.subr.mxu0 0.0
        %1287 = vmatpush2.msra.mxu0 0.0
        %1288 = vmatprep.mubr.f32.mxu0 0.0
        %v1289 = vand.u32 %v861, 4294901760
        %v1290 = vsub.f32 %v861, %v1289
        %v1291 = vand.u32 %v1290, 4294901760
        %1292 = vmatmul.mubr.f32.gmra.mxu0 %v1291
        %v1293 = vpop.f32.mrf.mxu0
        %v1294 = vadd.f32 %v1205, %v1293
        %v1295 = vpop.f32.mrf.mxu0
        %1296 = vdwg.mxu0
        %1297 = vmatprep.subr.mxu0 0.0
        %v1298 = vand.u32 %v217, 4294901760
        %v1299 = vsub.f32 %v217, %v1298
        %v1300 = vand.u32 %v1299, 4294901760
        %1301 = vmatpush1.msra.mxu0 %v1300
        %1302 = vmatprep.subr.mxu0 0.0
        %v1303 = vand.u32 %v216, 4294901760
        %v1304 = vsub.f32 %v216, %v1303
        %v1305 = vand.u32 %v1304, 4294901760
        %1306 = vmatpush1.msra.mxu0 %v1305
        %1307 = vmatprep.subr.mxu0 0.0
        %v1308 = vand.u32 %v215, 4294901760
        %v1309 = vsub.f32 %v215, %v1308
        %v1310 = vand.u32 %v1309, 4294901760
        %1311 = vmatpush1.msra.mxu0 %v1310
        %1312 = vmatprep.subr.mxu0 0.0
        %v1313 = vand.u32 %v214, 4294901760
        %v1314 = vsub.f32 %v214, %v1313
        %v1315 = vand.u32 %v1314, 4294901760
        %1316 = vmatpush1.msra.mxu0 %v1315
        %1317 = vmatprep.subr.mxu0 0.0
        %v1318 = vand.u32 %v213, 4294901760
        %v1319 = vsub.f32 %v213, %v1318
        %v1320 = vand.u32 %v1319, 4294901760
        %1321 = vmatpush1.msra.mxu0 %v1320
        %1322 = vmatprep.subr.mxu0 0.0
        %v1323 = vand.u32 %v212, 4294901760
        %v1324 = vsub.f32 %v212, %v1323
        %v1325 = vand.u32 %v1324, 4294901760
        %1326 = vmatpush1.msra.mxu0 %v1325
        %1327 = vmatprep.subr.mxu0 0.0
        %v1328 = vand.u32 %v211, 4294901760
        %v1329 = vsub.f32 %v211, %v1328
        %v1330 = vand.u32 %v1329, 4294901760
        %1331 = vmatpush1.msra.mxu0 %v1330
        %1332 = vmatprep.subr.mxu0 0.0
        %v1333 = vand.u32 %v210, 4294901760
        %v1334 = vsub.f32 %v210, %v1333
        %v1335 = vand.u32 %v1334, 4294901760
        %1336 = vmatpush1.msra.mxu0 %v1335
        %1337 = vmatprep.subr.mxu0 0.0
        %v1338 = vand.u32 %v209, 4294901760
        %v1339 = vsub.f32 %v209, %v1338
        %v1340 = vand.u32 %v1339, 4294901760
        %1341 = vmatpush1.msra.mxu0 %v1340
        %1342 = vmatprep.subr.mxu0 0.0
        %v1343 = vand.u32 %v208, 4294901760
        %v1344 = vsub.f32 %v208, %v1343
        %v1345 = vand.u32 %v1344, 4294901760
        %1346 = vmatpush1.msra.mxu0 %v1345
        %1347 = vmatprep.subr.mxu0 0.0
        %v1348 = vand.u32 %v207, 4294901760
        %v1349 = vsub.f32 %v207, %v1348
        %v1350 = vand.u32 %v1349, 4294901760
        %1351 = vmatpush1.msra.mxu0 %v1350
        %1352 = vmatprep.subr.mxu0 0.0
        %v1353 = vand.u32 %v206, 4294901760
        %v1354 = vsub.f32 %v206, %v1353
        %v1355 = vand.u32 %v1354, 4294901760
        %1356 = vmatpush1.msra.mxu0 %v1355
        %1357 = vmatprep.subr.mxu0 0.0
        %v1358 = vand.u32 %v205, 4294901760
        %v1359 = vsub.f32 %v205, %v1358
        %v1360 = vand.u32 %v1359, 4294901760
        %1361 = vmatpush1.msra.mxu0 %v1360
        %1362 = vmatprep.subr.mxu0 0.0
        %v1363 = vand.u32 %v204, 4294901760
        %v1364 = vsub.f32 %v204, %v1363
        %v1365 = vand.u32 %v1364, 4294901760
        %1366 = vmatpush1.msra.mxu0 %v1365
        %1367 = vmatprep.subr.mxu0 0.0
        %v1368 = vand.u32 %v203, 4294901760
        %v1369 = vsub.f32 %v203, %v1368
        %v1370 = vand.u32 %v1369, 4294901760
        %1371 = vmatpush1.msra.mxu0 %v1370
        %1372 = vmatprep.subr.mxu0 0.0
        %v1373 = vand.u32 %v202, 4294901760
        %v1374 = vsub.f32 %v202, %v1373
        %v1375 = vand.u32 %v1374, 4294901760
        %1376 = vmatpush1.msra.mxu0 %v1375
        %1377 = vmatprep.subr.mxu0 0.0
        %1378 = vmatpush2.msra.mxu0 0.0
        %1379 = vmatprep.subr.mxu0 0.0
        %1380 = vmatpush2.msra.mxu0 0.0
        %1381 = vmatprep.subr.mxu0 0.0
        %1382 = vmatpush2.msra.mxu0 0.0
        %1383 = vmatprep.subr.mxu0 0.0
        %1384 = vmatpush2.msra.mxu0 0.0
        %1385 = vmatprep.subr.mxu0 0.0
        %1386 = vmatpush2.msra.mxu0 0.0
        %1387 = vmatprep.subr.mxu0 0.0
        %1388 = vmatpush2.msra.mxu0 0.0
        %1389 = vmatprep.subr.mxu0 0.0
        %1390 = vmatpush2.msra.mxu0 0.0
        %1391 = vmatprep.subr.mxu0 0.0
        %1392 = vmatpush2.msra.mxu0 0.0
        %1393 = vmatprep.subr.mxu0 0.0
        %1394 = vmatpush2.msra.mxu0 0.0
        %1395 = vmatprep.subr.mxu0 0.0
        %1396 = vmatpush2.msra.mxu0 0.0
        %1397 = vmatprep.subr.mxu0 0.0
        %1398 = vmatpush2.msra.mxu0 0.0
        %1399 = vmatprep.subr.mxu0 0.0
        %1400 = vmatpush2.msra.mxu0 0.0
        %1401 = vmatprep.subr.mxu0 0.0
        %1402 = vmatpush2.msra.mxu0 0.0
        %1403 = vmatprep.subr.mxu0 0.0
        %1404 = vmatpush2.msra.mxu0 0.0
        %1405 = vmatprep.subr.mxu0 0.0
        %1406 = vmatpush2.msra.mxu0 0.0
        %1407 = vmatprep.subr.mxu0 0.0
        %1408 = vmatpush2.msra.mxu0 0.0
        %1409 = vmatprep.mubr.f32.mxu0 0.0
        %v1410 = vand.u32 %v861, 4294901760
        %1411 = vmatmul.mubr.f32.gmra.mxu0 %v1410
        %v1412 = vpop.f32.mrf.mxu0
        %v1413 = vadd.f32 %v1294, %v1412
        %v1414 = vpop.f32.mrf.mxu0
        %1415 = vdwg.mxu0
        %1416 = vmatprep.subr.mxu0 0.0
        %v1417 = vand.u32 %v217, 4294901760
        %1418 = vmatpush1.msra.mxu0 %v1417
        %1419 = vmatprep.subr.mxu0 0.0
        %v1420 = vand.u32 %v216, 4294901760
        %1421 = vmatpush1.msra.mxu0 %v1420
        %1422 = vmatprep.subr.mxu0 0.0
        %v1423 = vand.u32 %v215, 4294901760
        %1424 = vmatpush1.msra.mxu0 %v1423
        %1425 = vmatprep.subr.mxu0 0.0
        %v1426 = vand.u32 %v214, 4294901760
        %1427 = vmatpush1.msra.mxu0 %v1426
        %1428 = vmatprep.subr.mxu0 0.0
        %v1429 = vand.u32 %v213, 4294901760
        %1430 = vmatpush1.msra.mxu0 %v1429
        %1431 = vmatprep.subr.mxu0 0.0
        %v1432 = vand.u32 %v212, 4294901760
        %1433 = vmatpush1.msra.mxu0 %v1432
        %1434 = vmatprep.subr.mxu0 0.0
        %v1435 = vand.u32 %v211, 4294901760
        %1436 = vmatpush1.msra.mxu0 %v1435
        %1437 = vmatprep.subr.mxu0 0.0
        %v1438 = vand.u32 %v210, 4294901760
        %1439 = vmatpush1.msra.mxu0 %v1438
        %1440 = vmatprep.subr.mxu0 0.0
        %v1441 = vand.u32 %v209, 4294901760
        %1442 = vmatpush1.msra.mxu0 %v1441
        %1443 = vmatprep.subr.mxu0 0.0
        %v1444 = vand.u32 %v208, 4294901760
        %1445 = vmatpush1.msra.mxu0 %v1444
        %1446 = vmatprep.subr.mxu0 0.0
        %v1447 = vand.u32 %v207, 4294901760
        %1448 = vmatpush1.msra.mxu0 %v1447
        %1449 = vmatprep.subr.mxu0 0.0
        %v1450 = vand.u32 %v206, 4294901760
        %1451 = vmatpush1.msra.mxu0 %v1450
        %1452 = vmatprep.subr.mxu0 0.0
        %v1453 = vand.u32 %v205, 4294901760
        %1454 = vmatpush1.msra.mxu0 %v1453
        %1455 = vmatprep.subr.mxu0 0.0
        %v1456 = vand.u32 %v204, 4294901760
        %1457 = vmatpush1.msra.mxu0 %v1456
        %1458 = vmatprep.subr.mxu0 0.0
        %v1459 = vand.u32 %v203, 4294901760
        %1460 = vmatpush1.msra.mxu0 %v1459
        %1461 = vmatprep.subr.mxu0 0.0
        %v1462 = vand.u32 %v202, 4294901760
        %1463 = vmatpush1.msra.mxu0 %v1462
        %1464 = vmatprep.subr.mxu0 0.0
        %1465 = vmatpush2.msra.mxu0 0.0
        %1466 = vmatprep.subr.mxu0 0.0
        %1467 = vmatpush2.msra.mxu0 0.0
        %1468 = vmatprep.subr.mxu0 0.0
        %1469 = vmatpush2.msra.mxu0 0.0
        %1470 = vmatprep.subr.mxu0 0.0
        %1471 = vmatpush2.msra.mxu0 0.0
        %1472 = vmatprep.subr.mxu0 0.0
        %1473 = vmatpush2.msra.mxu0 0.0
        %1474 = vmatprep.subr.mxu0 0.0
        %1475 = vmatpush2.msra.mxu0 0.0
        %1476 = vmatprep.subr.mxu0 0.0
        %1477 = vmatpush2.msra.mxu0 0.0
        %1478 = vmatprep.subr.mxu0 0.0
        %1479 = vmatpush2.msra.mxu0 0.0
        %1480 = vmatprep.subr.mxu0 0.0
        %1481 = vmatpush2.msra.mxu0 0.0
        %1482 = vmatprep.subr.mxu0 0.0
        %1483 = vmatpush2.msra.mxu0 0.0
        %1484 = vmatprep.subr.mxu0 0.0
        %1485 = vmatpush2.msra.mxu0 0.0
        %1486 = vmatprep.subr.mxu0 0.0
        %1487 = vmatpush2.msra.mxu0 0.0
        %1488 = vmatprep.subr.mxu0 0.0
        %1489 = vmatpush2.msra.mxu0 0.0
        %1490 = vmatprep.subr.mxu0 0.0
        %1491 = vmatpush2.msra.mxu0 0.0
        %1492 = vmatprep.subr.mxu0 0.0
        %1493 = vmatpush2.msra.mxu0 0.0
        %1494 = vmatprep.subr.mxu0 0.0
        %1495 = vmatpush2.msra.mxu0 0.0
        %1496 = vmatprep.mubr.f32.mxu0 0.0
        %v1497 = vand.u32 %v861, 4294901760
        %1498 = vmatmul.mubr.f32.gmra.mxu0 %v1497
        %v1499 = vpop.f32.mrf.mxu0
        %v1500 = vadd.f32 %v1413, %v1499
        %v1501 = vpop.f32.mrf.mxu0
        %1502 = vdwg.mxu0
        %v1503 = vmul.f32 %v1500, 0.03125
        %v1504 = vadd.f32 %v1503, 1e-06
        %v1505 = vrsqrt.pop %v1504
        %v1506 = vld [vmem:[%s2] sm:$0x1]
        %v1507 = vld [vmem:[%s2 + $0x1] sm:$0x1]
        %v1508 = vlaneseq
        %v1509 = vshrl.u32 %v1508, 7
        %v1510 = vsub.s32 0, %v1509
        %v1511 = vrot.slane %v1506, %v1510
        %v1512 = vmul.f32 %v1505, %v1511
        %v1513 = vmul.f32 %v860, %v1512
        %v1514 = vlaneseq
        %v1515 = vshrl.u32 %v1514, 7
        %v1516 = vsub.s32 0, %v1515
        %v1517 = vrot.slane %v1507, %v1516
        %v1518 = vadd.f32 %v1513, %v1517
        %1519 = vst [vmem:[%s200] sm:$0xff] %v1518
        %s1520 = sand.u32 %s97, 1
        %s1521 = scalar_lea.sflag [#allocation4], %s1520
        %s1522 = sand.u32 %s97, 1
        %s1523 = smul.addr %s1522, 8
        %s1524 = scalar_lea.vmem [#allocation7], %s1523
        // Predicated region
        $region41: #{tpu_custom_call.1} parent=31 // pred_check
          %p1525 = pneg %p107
        $region42: #{tpu_custom_call.1} parent=31 // pred_check_branch
          %1527 = sbr.rel (%p1525) target = $region44
        $region43: #{tpu_custom_call.1} parent=31 // pred_region
          %s1529 = ssub.s32 128, 128
          %1530 = vsyncadd %s1521, %s1529
          %s1531 = smul.addr %s21, 128
          %s1532 = scalar_lea.hbm %s3, %s1531
          %s1534 = sshll.u32 %s1524, 4
          %s1535 = int_to_ptr.vmem [resolvable:$true] %s1534
          %1537 = dma.vmem_to_hbm [thread:$0]  %s1535, 128, %s1532, %s1521
        $region44: #{tpu_custom_call.1} parent=31 // pred_fallthru
          _
      $region32: #{tpu_custom_call.1} parent=5 // pred_fallthru
        _
      %p1538 = scmp.le.s32.totalorder 2, %s16
      // Predicated region
      $region45: #{tpu_custom_call.1} parent=5 // pred_check
        %p1539 = pneg %p1538
      $region46: #{tpu_custom_call.1} parent=5 // pred_check_branch
        %1541 = sbr.rel (%p1539) target = $region48
      $region47: #{tpu_custom_call.1} parent=5 // pred_region
        %s1542 = ssub.s32 %s16, 2
        // Predicated region
        $region49: #{tpu_custom_call.1} parent=47 // pred_check
          %p1543 = pneg %p113
        $region50: #{tpu_custom_call.1} parent=47 // pred_check_branch
          %1545 = sbr.rel (%p1543) target = $region52
        $region51: #{tpu_custom_call.1} parent=47 // pred_region
          %s1546 = sand.u32 %s98, 1
          %s1547 = scalar_lea.sflag [#allocation4], %s1546
          %s1548 = sand.u32 %s98, 1
          %s1549 = smul.addr %s1548, 8
          %s1550 = scalar_lea.vmem [#allocation7], %s1549
          %1551 = dma.done %s1547, 128
        $region52: #{tpu_custom_call.1} parent=47 // pred_fallthru
          _
      $region48: #{tpu_custom_call.1} parent=5 // pred_fallthru
        _
    $region6: #{tpu_custom_call.1} parent=1 // loop_footer
      %s20 = sadd.s32 1, %s16
    $region7: #{tpu_custom_call.1} parent=1 // loop_footer_branch
      %15 = sbr.rel target = $region3
    $region8: #{tpu_custom_call.1} parent=1 // loop_exit
      _
    %1552 = vsyncpa [#allocation3], 1
    %s1553 = scalar_lea.sflag [#allocation3], 1
    %1554 = vsyncpa %s1553, 1
    %1555 = vsyncpa [#allocation6], 1
    %1556 = vsyncpa [#allocation4], 1
    %s1557 = scalar_lea.sflag [#allocation4], 1
    %1558 = vsyncpa %s1557, 1

</llo_original>
